<compile_context>
chip_gen: v5e
topology: v5e:2x2
jax: 0.10.0
libtpu: 0.0.40
codegen_flags: <defaults>
</compile_context>

<pallas_src>
import jax
import jax.numpy as jnp
from jax import lax
from jax.experimental import pallas as pl
from jax.experimental.pallas import tpu as pltpu

EPS = 1e-5


def _pick_tile(n, target=512):
    """Largest multiple-of-8 divisor of n that is <= target (else n itself)."""
    best = None
    for d in range(8, min(n, target) + 1, 8):
        if n % d == 0:
            best = d
    return best if best is not None else n


# ----------------------------- Pallas kernels ------------------------------ #
def _accumulate_stats(stats_ref, y):
    """Accumulate per-channel sum / sum-of-squares across the (arbitrary) grid axis."""
    part = jnp.concatenate(
        [jnp.sum(y, axis=0, keepdims=True), jnp.sum(y * y, axis=0, keepdims=True)],
        axis=0)

    @pl.when(pl.program_id(0) == 0)
    def _():
        stats_ref[...] = jnp.zeros_like(stats_ref)

    stats_ref[...] += part


def conv_stats_kernel(x_ref, w_ref, b_ref, y_ref, stats_ref):
    # y = x @ W + b ; write conv output tile, accumulate BN stats.
    y = jnp.dot(x_ref[...], w_ref[...], preferred_element_type=jnp.float32) + b_ref[...]
    y_ref[...] = y
    _accumulate_stats(stats_ref, y)


def bnrelu_conv_stats_kernel(x_ref, scale_ref, shift_ref, w_ref, b_ref, y_ref, stats_ref):
    # a = relu(x*scale + shift) ; y = a @ W + b ; accumulate BN stats of y.
    a = jnp.maximum(x_ref[...] * scale_ref[...] + shift_ref[...], 0.0)
    y = jnp.dot(a, w_ref[...], preferred_element_type=jnp.float32) + b_ref[...]
    y_ref[...] = y
    _accumulate_stats(stats_ref, y)


def gconv_stats_kernel(x_ref, scale_ref, shift_ref, w2_ref, b2_ref, y_ref, stats_ref, pad_ref):
    # x_ref: (1, H, W, Ch) pre-BN conv1 output for one image.
    # Apply folded BN1+ReLU, zero-pad into VMEM scratch, then grouped 3x3 conv
    # (groups=2) as two dense per-group matmuls with the 9 taps packed into K.
    _, H, W, Ch = x_ref.shape
    Cg = Ch // 2
    a = jnp.maximum(x_ref[0] * scale_ref[...] + shift_ref[...], 0.0)       # (H, W, Ch)
    pad_ref[...] = jnp.zeros(pad_ref.shape, pad_ref.dtype)
    pad_ref[1:H + 1, 1:W + 1, :] = a
    outs = []
    for g in range(2):
        taps = []
        for dy in range(3):
            for dx in range(3):
                taps.append(pad_ref[dy:dy + H, dx:dx + W, g * Cg:(g + 1) * Cg])
        patches = jnp.concatenate(taps, axis=-1).reshape(H * W, 9 * Cg)    # (H*W, 9*Cg)
        outs.append(jnp.dot(patches, w2_ref[g], preferred_element_type=jnp.float32))
    y = jnp.concatenate(outs, axis=-1) + b2_ref[...]                       # (H*W, Ch)
    y_ref[...] = y.reshape(1, H, W, Ch)
    _accumulate_stats(stats_ref, y)


def bn_add_relu_kernel(x_ref, y_ref, scale_ref, shift_ref, o_ref):
    # out = relu(x + y*scale + shift)   (lane-dense slab layout)
    o_ref[...] = jnp.maximum(
        x_ref[...] + y_ref[...] * scale_ref[...] + shift_ref[...], 0.0)


# ------------------------------ wrapper ------------------------------------ #
def _fold_bn(stats, count, gamma, beta):
    mean = stats[0] / count
    var = stats[1] / count - mean * mean          # biased (training-mode BN)
    scale = gamma * lax.rsqrt(var + EPS)
    shift = beta - scale * mean
    return scale[None, :], shift[None, :]


def prepare_weights(p):
    """One-time weight layout prep (matmul-ready); keep out of the hot path."""
    Ch = p["w1"].shape[0]
    Cg = Ch // 2
    W1 = jnp.transpose(p["w1"][:, :, 0, 0], (1, 0))                       # (C, Ch)
    W3 = jnp.transpose(p["w3"][:, :, 0, 0], (1, 0))                       # (Ch, C)
    w2 = p["w2"].reshape(2, Cg, Cg, 3, 3)                                 # (g, cout, cin, ky, kx)
    W2 = jnp.transpose(w2, (0, 3, 4, 2, 1)).reshape(2, 9 * Cg, Cg)        # (g, (ky,kx,cin), cout)
    return dict(W1=W1, W2=W2, W3=W3,
                b1=p["b1"][None, :], b2=p["b2"][None, :], b3=p["b3"][None, :],
                g1=p["g1"], be1=p["be1"], g2=p["g2"], be2=p["be2"],
                g3=p["g3"], be3=p["be3"])


def residual_block_forward(x_nchw, wp):
    N, C, H, W = x_nchw.shape
    Ch = C // 2
    Cg = Ch // 2
    R = N * H * W
    TR = _pick_tile(R)
    x_rows = jnp.transpose(x_nchw, (0, 2, 3, 1)).reshape(R, C)

    # --- Pass 1: conv1x1 + bias, accumulate BN1 stats (R-tiled, pipelined) ---
    y1, stats1 = pl.pallas_call(
        conv_stats_kernel,
        grid=(R // TR,),
        in_specs=[pl.BlockSpec((TR, C), lambda i: (i, 0)),
                  pl.BlockSpec((C, Ch), lambda i: (0, 0)),
                  pl.BlockSpec((1, Ch), lambda i: (0, 0))],
        out_specs=(pl.BlockSpec((TR, Ch), lambda i: (i, 0)),
                   pl.BlockSpec((2, Ch), lambda i: (0, 0))),
        out_shape=(jax.ShapeDtypeStruct((R, Ch), jnp.float32),
                   jax.ShapeDtypeStruct((2, Ch), jnp.float32)),
        compiler_params=pltpu.CompilerParams(dimension_semantics=("arbitrary",)),
    )(x_rows, wp["W1"], wp["b1"])
    scale1, shift1 = _fold_bn(stats1, R, wp["g1"], wp["be1"])

    # --- Pass 2: folded BN1+ReLU, grouped 3x3 conv (groups=2), BN2 stats ---
    y1_nhwc = y1.reshape(N, H, W, Ch)
    y2_nhwc, stats2 = pl.pallas_call(
        gconv_stats_kernel,
        grid=(N,),
        in_specs=[pl.BlockSpec((1, H, W, Ch), lambda n: (n, 0, 0, 0)),
                  pl.BlockSpec((1, Ch), lambda n: (0, 0)),
                  pl.BlockSpec((1, Ch), lambda n: (0, 0)),
                  pl.BlockSpec((2, 9 * Cg, Cg), lambda n: (0, 0, 0)),
                  pl.BlockSpec((1, Ch), lambda n: (0, 0))],
        out_specs=(pl.BlockSpec((1, H, W, Ch), lambda n: (n, 0, 0, 0)),
                   pl.BlockSpec((2, Ch), lambda n: (0, 0))),
        out_shape=(jax.ShapeDtypeStruct((N, H, W, Ch), jnp.float32),
                   jax.ShapeDtypeStruct((2, Ch), jnp.float32)),
        scratch_shapes=[pltpu.VMEM((H + 2, W + 2, Ch), jnp.float32)],
        compiler_params=pltpu.CompilerParams(dimension_semantics=("arbitrary",)),
    )(y1_nhwc, scale1, shift1, wp["W2"], wp["b2"])
    scale2, shift2 = _fold_bn(stats2, R, wp["g2"], wp["be2"])

    # --- Pass 3: folded BN2+ReLU, conv1x1, accumulate BN3 stats (R-tiled) ---
    y2_rows = y2_nhwc.reshape(R, Ch)
    y3, stats3 = pl.pallas_call(
        bnrelu_conv_stats_kernel,
        grid=(R // TR,),
        in_specs=[pl.BlockSpec((TR, Ch), lambda i: (i, 0)),
                  pl.BlockSpec((1, Ch), lambda i: (0, 0)),
                  pl.BlockSpec((1, Ch), lambda i: (0, 0)),
                  pl.BlockSpec((Ch, C), lambda i: (0, 0)),
                  pl.BlockSpec((1, C), lambda i: (0, 0))],
        out_specs=(pl.BlockSpec((TR, C), lambda i: (i, 0)),
                   pl.BlockSpec((2, C), lambda i: (0, 0))),
        out_shape=(jax.ShapeDtypeStruct((R, C), jnp.float32),
                   jax.ShapeDtypeStruct((2, C), jnp.float32)),
        compiler_params=pltpu.CompilerParams(dimension_semantics=("arbitrary",)),
    )(y2_rows, scale2, shift2, wp["W3"], wp["b3"])
    scale3, shift3 = _fold_bn(stats3, R, wp["g3"], wp["be3"])

    # --- Pass 4: BN3 affine + residual add + ReLU on a lane-dense (N*H, W*C) slab ---
    NH, WC = N * H, W * C
    TNH = _pick_tile(NH)
    x_slab = x_rows.reshape(NH, WC)
    y3_slab = y3.reshape(NH, WC)
    scale3_row = jnp.tile(scale3[0], W)[None, :]          # per-channel pattern, tiled over W
    shift3_row = jnp.tile(shift3[0], W)[None, :]
    out_slab = pl.pallas_call(
        bn_add_relu_kernel,
        grid=(NH // TNH,),
        in_specs=[pl.BlockSpec((TNH, WC), lambda i: (i, 0)),
                  pl.BlockSpec((TNH, WC), lambda i: (i, 0)),
                  pl.BlockSpec((1, WC), lambda i: (0, 0)),
                  pl.BlockSpec((1, WC), lambda i: (0, 0))],
        out_specs=pl.BlockSpec((TNH, WC), lambda i: (i, 0)),
        out_shape=jax.ShapeDtypeStruct((NH, WC), jnp.float32),
        compiler_params=pltpu.CompilerParams(dimension_semantics=("parallel",)),
    )(x_slab, y3_slab, scale3_row, shift3_row)

    return jnp.transpose(out_slab.reshape(N, H, W, C), (0, 3, 1, 2))


# ------------------------- params & pure-JAX reference --------------------- #
def init_params(key, C):
    Ch = C // 2
    Cg = Ch // 2
    ks = jax.random.split(key, 12)
    n = lambda k, shape, s=0.2: s * jax.random.normal(k, shape, jnp.float32)
    return dict(
        w1=n(ks[0], (Ch, C, 1, 1)), b1=n(ks[1], (Ch,), 0.1),
        w2=n(ks[2], (Ch, Cg, 3, 3)), b2=n(ks[3], (Ch,), 0.1),
        w3=n(ks[4], (C, Ch, 1, 1)), b3=n(ks[5], (C,), 0.1),
        g1=1.0 + n(ks[6], (Ch,), 0.1), be1=n(ks[7], (Ch,), 0.1),
        g2=1.0 + n(ks[8], (Ch,), 0.1), be2=n(ks[9], (Ch,), 0.1),
        g3=1.0 + n(ks[10], (C,), 0.1), be3=n(ks[11], (C,), 0.1),
    )


def ref_forward(x, p):
    def bn(y, gamma, beta):
        mean = jnp.mean(y, axis=(0, 2, 3), keepdims=True)
        var = jnp.mean(jnp.square(y - mean), axis=(0, 2, 3), keepdims=True)
        return gamma[None, :, None, None] * (y - mean) * lax.rsqrt(var + EPS) \
            + beta[None, :, None, None]

    y = lax.conv_general_dilated(x, p["w1"], (1, 1), "VALID") + p["b1"][None, :, None, None]
    y = jnp.maximum(bn(y, p["g1"], p["be1"]), 0.0)
    y = lax.conv_general_dilated(y, p["w2"], (1, 1), ((1, 1), (1, 1)),
                                 feature_group_count=2) + p["b2"][None, :, None, None]
    y = jnp.maximum(bn(y, p["g2"], p["be2"]), 0.0)
    y = lax.conv_general_dilated(y, p["w3"], (1, 1), "VALID") + p["b3"][None, :, None, None]
    y = bn(y, p["g3"], p["be3"])
    return jnp.maximum(x + y, 0.0)


if __name__ == "__main__":
    key = jax.random.PRNGKey(0)
    kx, kp = jax.random.split(key)
    N, C, H, W = 2, 16, 8, 8
    x = jax.random.normal(kx, (N, C, H, W), jnp.float32)
    params = init_params(kp, C)
    wp = prepare_weights(params)

    fwd = jax.jit(residual_block_forward)
    out = jax.block_until_ready(fwd(x, wp))

    ref = ref_forward(x, params)
    assert out.shape == (N, C, H, W)
    max_err = float(jnp.max(jnp.abs(out - ref)))
    assert jnp.allclose(out, ref, atol=5e-4, rtol=5e-4), f"max_err={max_err}"
    print("KERNEL_OK")
</pallas_src>

<mosaic_0001>
module attributes {stable_mosaic.version = 11 : i64} {
  func.func @bnrelu_conv_stats_kernel(%arg0: i32, %arg1: memref<128x8xf32, #tpu.memory_space<vmem>>, %arg2: memref<1x8xf32, #tpu.memory_space<vmem>>, %arg3: memref<1x8xf32, #tpu.memory_space<vmem>>, %arg4: memref<8x16xf32, #tpu.memory_space<vmem>>, %arg5: memref<1x16xf32, #tpu.memory_space<vmem>>, %arg6: memref<128x16xf32, #tpu.memory_space<vmem>>, %arg7: memref<2x16xf32, #tpu.memory_space<vmem>>) attributes {dimension_semantics = [#tpu.dimension_semantics<arbitrary>], iteration_bounds = array<i64: 1>, scalar_prefetch = 0 : i64, scratch_operands = 0 : i64, tpu.core_type = #tpu.core_type<tc>, window_params = [{transform_indices = @transform_0, window_bounds = array<i64: 128, 8>}, {pipeline_mode = #tpu.pipeline_mode<synchronous>, transform_indices = @transform_1, window_bounds = array<i64: 1, 8>}, {pipeline_mode = #tpu.pipeline_mode<synchronous>, transform_indices = @transform_2, window_bounds = array<i64: 1, 8>}, {pipeline_mode = #tpu.pipeline_mode<synchronous>, transform_indices = @transform_3, window_bounds = array<i64: 8, 16>}, {pipeline_mode = #tpu.pipeline_mode<synchronous>, transform_indices = @transform_4, window_bounds = array<i64: 1, 16>}, {transform_indices = @transform_5, window_bounds = array<i64: 128, 16>}, {pipeline_mode = #tpu.pipeline_mode<synchronous>, transform_indices = @transform_6, window_bounds = array<i64: 2, 16>}]} {
    %c0 = arith.constant 0 : index
    %c0_0 = arith.constant 0 : index
    %0 = vector.load %arg1[%c0, %c0_0] : memref<128x8xf32, #tpu.memory_space<vmem>>, vector<128x8xf32>
    %c0_1 = arith.constant 0 : index
    %c0_2 = arith.constant 0 : index
    %1 = vector.load %arg2[%c0_1, %c0_2] : memref<1x8xf32, #tpu.memory_space<vmem>>, vector<1x8xf32>
    %2 = vector.broadcast %1 : vector<1x8xf32> to vector<128x8xf32>
    %3 = arith.mulf %0, %2 : vector<128x8xf32>
    %c0_3 = arith.constant 0 : index
    %c0_4 = arith.constant 0 : index
    %4 = vector.load %arg3[%c0_3, %c0_4] : memref<1x8xf32, #tpu.memory_space<vmem>>, vector<1x8xf32>
    %5 = vector.broadcast %4 : vector<1x8xf32> to vector<128x8xf32>
    %6 = arith.addf %3, %5 : vector<128x8xf32>
    %cst = arith.constant 0.000000e+00 : f32
    %7 = vector.broadcast %cst : f32 to vector<128x8xf32>
    %8 = arith.maximumf %6, %7 : vector<128x8xf32>
    %c0_5 = arith.constant 0 : index
    %c0_6 = arith.constant 0 : index
    %9 = vector.load %arg4[%c0_5, %c0_6] : memref<8x16xf32, #tpu.memory_space<vmem>>, vector<8x16xf32>
    %cst_7 = arith.constant dense<0.000000e+00> : vector<128x16xf32>
    %10 = tpu.matmul %8, %9, %cst_7 {dimension_numbers = #tpu.dot_dimension_numbers<[1], [0], [0], [1], [0, 0, 1, 1], [], []>} : vector<128x8xf32>, vector<8x16xf32>, vector<128x16xf32> -> vector<128x16xf32>
    %c0_8 = arith.constant 0 : index
    %c0_9 = arith.constant 0 : index
    %11 = vector.load %arg5[%c0_8, %c0_9] : memref<1x16xf32, #tpu.memory_space<vmem>>, vector<1x16xf32>
    %12 = vector.broadcast %11 : vector<1x16xf32> to vector<128x16xf32>
    %13 = arith.addf %10, %12 : vector<128x16xf32>
    %c0_10 = arith.constant 0 : index
    %c0_11 = arith.constant 0 : index
    %14 = vector.load %arg6[%c0_10, %c0_11] : memref<128x16xf32, #tpu.memory_space<vmem>>, vector<128x16xf32>
    tpu.vector_store %arg6[%c0_10, %c0_11], %13 {strides = array<i32>} : memref<128x16xf32, #tpu.memory_space<vmem>>, vector<128x16xf32>,
    %cst_12 = arith.constant dense<0.000000e+00> : vector<16xf32>
    %15 = vector.multi_reduction <add>, %13, %cst_12 [0] : vector<128x16xf32> to vector<16xf32>
    %16 = vector.shape_cast %15 : vector<16xf32> to vector<1x16xf32>
    %17 = arith.mulf %13, %13 : vector<128x16xf32>
    %cst_13 = arith.constant dense<0.000000e+00> : vector<16xf32>
    %18 = vector.multi_reduction <add>, %17, %cst_13 [0] : vector<128x16xf32> to vector<16xf32>
    %19 = vector.shape_cast %18 : vector<16xf32> to vector<1x16xf32>
    %20 = tpu.concatenate %16, %19 in 0 : vector<1x16xf32>, vector<1x16xf32> -> vector<2x16xf32>
    %c0_i32 = arith.constant 0 : i32
    %21 = arith.cmpi eq, %arg0, %c0_i32 : i32
    %22 = arith.extui %21 : i1 to i32
    %c0_i32_14 = arith.constant 0 : i32
    %23 = arith.cmpi ne, %22, %c0_i32_14 : i32
    scf.if %23 {
      %cst_19 = arith.constant 0.000000e+00 : f32
      %27 = vector.broadcast %cst_19 : f32 to vector<2x16xf32>
      %c0_20 = arith.constant 0 : index
      %c0_21 = arith.constant 0 : index
      %28 = vector.load %arg7[%c0_20, %c0_21] : memref<2x16xf32, #tpu.memory_space<vmem>>, vector<2x16xf32>
      tpu.vector_store %arg7[%c0_20, %c0_21], %27 {strides = array<i32>} : memref<2x16xf32, #tpu.memory_space<vmem>>, vector<2x16xf32>,
    } else {
    }
    %c0_15 = arith.constant 0 : index
    %c0_16 = arith.constant 0 : index
    %24 = vector.load %arg7[%c0_15, %c0_16] : memref<2x16xf32, #tpu.memory_space<vmem>>, vector<2x16xf32>
    %25 = arith.addf %24, %20 : vector<2x16xf32>
    %c0_17 = arith.constant 0 : index
    %c0_18 = arith.constant 0 : index
    %26 = vector.load %arg7[%c0_17, %c0_18] : memref<2x16xf32, #tpu.memory_space<vmem>>, vector<2x16xf32>
    tpu.vector_store %arg7[%c0_17, %c0_18], %25 {strides = array<i32>} : memref<2x16xf32, #tpu.memory_space<vmem>>, vector<2x16xf32>,
    return
  }
  func.func @transform_0(%arg0: i32) -> (i32, i32) {
    %c0_i32 = arith.constant 0 : i32
    %c0_i32_0 = arith.constant 0 : i32
    return %arg0, %c0_i32 : i32, i32
  }
  func.func @transform_1(%arg0: i32) -> (i32, i32) {
    %c0_i32 = arith.constant 0 : i32
    %c0_i32_0 = arith.constant 0 : i32
    %c0_i32_1 = arith.constant 0 : i32
    return %c0_i32, %c0_i32_0 : i32, i32
  }
  func.func @transform_2(%arg0: i32) -> (i32, i32) {
    %c0_i32 = arith.constant 0 : i32
    %c0_i32_0 = arith.constant 0 : i32
    %c0_i32_1 = arith.constant 0 : i32
    return %c0_i32, %c0_i32_0 : i32, i32
  }
  func.func @transform_3(%arg0: i32) -> (i32, i32) {
    %c0_i32 = arith.constant 0 : i32
    %c0_i32_0 = arith.constant 0 : i32
    %c0_i32_1 = arith.constant 0 : i32
    return %c0_i32, %c0_i32_0 : i32, i32
  }
  func.func @transform_4(%arg0: i32) -> (i32, i32) {
    %c0_i32 = arith.constant 0 : i32
    %c0_i32_0 = arith.constant 0 : i32
    %c0_i32_1 = arith.constant 0 : i32
    return %c0_i32, %c0_i32_0 : i32, i32
  }
  func.func @transform_5(%arg0: i32) -> (i32, i32) {
    %c0_i32 = arith.constant 0 : i32
    %c0_i32_0 = arith.constant 0 : i32
    return %arg0, %c0_i32 : i32, i32
  }
  func.func @transform_6(%arg0: i32) -> (i32, i32) {
    %c0_i32 = arith.constant 0 : i32
    %c0_i32_0 = arith.constant 0 : i32
    %c0_i32_1 = arith.constant 0 : i32
    return %c0_i32, %c0_i32_0 : i32, i32
  }
}

module attributes {stable_mosaic.version = 11 : i64} {
  func.func @conv_stats_kernel(%arg0: i32, %arg1: memref<128x16xf32, #tpu.memory_space<vmem>>, %arg2: memref<16x8xf32, #tpu.memory_space<vmem>>, %arg3: memref<1x8xf32, #tpu.memory_space<vmem>>, %arg4: memref<128x8xf32, #tpu.memory_space<vmem>>, %arg5: memref<2x8xf32, #tpu.memory_space<vmem>>) attributes {dimension_semantics = [#tpu.dimension_semantics<arbitrary>], iteration_bounds = array<i64: 1>, scalar_prefetch = 0 : i64, scratch_operands = 0 : i64, tpu.core_type = #tpu.core_type<tc>, window_params = [{transform_indices = @transform_0, window_bounds = array<i64: 128, 16>}, {pipeline_mode = #tpu.pipeline_mode<synchronous>, transform_indices = @transform_1, window_bounds = array<i64: 16, 8>}, {pipeline_mode = #tpu.pipeline_mode<synchronous>, transform_indices = @transform_2, window_bounds = array<i64: 1, 8>}, {transform_indices = @transform_3, window_bounds = array<i64: 128, 8>}, {pipeline_mode = #tpu.pipeline_mode<synchronous>, transform_indices = @transform_4, window_bounds = array<i64: 2, 8>}]} {
    %c0 = arith.constant 0 : index
    %c0_0 = arith.constant 0 : index
    %0 = vector.load %arg1[%c0, %c0_0] : memref<128x16xf32, #tpu.memory_space<vmem>>, vector<128x16xf32>
    %c0_1 = arith.constant 0 : index
    %c0_2 = arith.constant 0 : index
    %1 = vector.load %arg2[%c0_1, %c0_2] : memref<16x8xf32, #tpu.memory_space<vmem>>, vector<16x8xf32>
    %cst = arith.constant dense<0.000000e+00> : vector<128x8xf32>
    %2 = tpu.matmul %0, %1, %cst {dimension_numbers = #tpu.dot_dimension_numbers<[1], [0], [0], [1], [0, 0, 1, 1], [], []>} : vector<128x16xf32>, vector<16x8xf32>, vector<128x8xf32> -> vector<128x8xf32>
    %c0_3 = arith.constant 0 : index
    %c0_4 = arith.constant 0 : index
    %3 = vector.load %arg3[%c0_3, %c0_4] : memref<1x8xf32, #tpu.memory_space<vmem>>, vector<1x8xf32>
    %4 = vector.broadcast %3 : vector<1x8xf32> to vector<128x8xf32>
    %5 = arith.addf %2, %4 : vector<128x8xf32>
    %c0_5 = arith.constant 0 : index
    %c0_6 = arith.constant 0 : index
    %6 = vector.load %arg4[%c0_5, %c0_6] : memref<128x8xf32, #tpu.memory_space<vmem>>, vector<128x8xf32>
    tpu.vector_store %arg4[%c0_5, %c0_6], %5 {strides = array<i32>} : memref<128x8xf32, #tpu.memory_space<vmem>>, vector<128x8xf32>,
    %cst_7 = arith.constant dense<0.000000e+00> : vector<8xf32>
    %7 = vector.multi_reduction <add>, %5, %cst_7 [0] : vector<128x8xf32> to vector<8xf32>
    %8 = vector.shape_cast %7 : vector<8xf32> to vector<1x8xf32>
    %9 = arith.mulf %5, %5 : vector<128x8xf32>
    %cst_8 = arith.constant dense<0.000000e+00> : vector<8xf32>
    %10 = vector.multi_reduction <add>, %9, %cst_8 [0] : vector<128x8xf32> to vector<8xf32>
    %11 = vector.shape_cast %10 : vector<8xf32> to vector<1x8xf32>
    %12 = tpu.concatenate %8, %11 in 0 : vector<1x8xf32>, vector<1x8xf32> -> vector<2x8xf32>
    %c0_i32 = arith.constant 0 : i32
    %13 = arith.cmpi eq, %arg0, %c0_i32 : i32
    %14 = arith.extui %13 : i1 to i32
    %c0_i32_9 = arith.constant 0 : i32
    %15 = arith.cmpi ne, %14, %c0_i32_9 : i32
    scf.if %15 {
      %cst_14 = arith.constant 0.000000e+00 : f32
      %19 = vector.broadcast %cst_14 : f32 to vector<2x8xf32>
      %c0_15 = arith.constant 0 : index
      %c0_16 = arith.constant 0 : index
      %20 = vector.load %arg5[%c0_15, %c0_16] : memref<2x8xf32, #tpu.memory_space<vmem>>, vector<2x8xf32>
      tpu.vector_store %arg5[%c0_15, %c0_16], %19 {strides = array<i32>} : memref<2x8xf32, #tpu.memory_space<vmem>>, vector<2x8xf32>,
    } else {
    }
    %c0_10 = arith.constant 0 : index
    %c0_11 = arith.constant 0 : index
    %16 = vector.load %arg5[%c0_10, %c0_11] : memref<2x8xf32, #tpu.memory_space<vmem>>, vector<2x8xf32>
    %17 = arith.addf %16, %12 : vector<2x8xf32>
    %c0_12 = arith.constant 0 : index
    %c0_13 = arith.constant 0 : index
    %18 = vector.load %arg5[%c0_12, %c0_13] : memref<2x8xf32, #tpu.memory_space<vmem>>, vector<2x8xf32>
    tpu.vector_store %arg5[%c0_12, %c0_13], %17 {strides = array<i32>} : memref<2x8xf32, #tpu.memory_space<vmem>>, vector<2x8xf32>,
    return
  }
  func.func @transform_0(%arg0: i32) -> (i32, i32) {
    %c0_i32 = arith.constant 0 : i32
    %c0_i32_0 = arith.constant 0 : i32
    return %arg0, %c0_i32 : i32, i32
  }
  func.func @transform_1(%arg0: i32) -> (i32, i32) {
    %c0_i32 = arith.constant 0 : i32
    %c0_i32_0 = arith.constant 0 : i32
    %c0_i32_1 = arith.constant 0 : i32
    return %c0_i32, %c0_i32_0 : i32, i32
  }
  func.func @transform_2(%arg0: i32) -> (i32, i32) {
    %c0_i32 = arith.constant 0 : i32
    %c0_i32_0 = arith.constant 0 : i32
    %c0_i32_1 = arith.constant 0 : i32
    return %c0_i32, %c0_i32_0 : i32, i32
  }
  func.func @transform_3(%arg0: i32) -> (i32, i32) {
    %c0_i32 = arith.constant 0 : i32
    %c0_i32_0 = arith.constant 0 : i32
    return %arg0, %c0_i32 : i32, i32
  }
  func.func @transform_4(%arg0: i32) -> (i32, i32) {
    %c0_i32 = arith.constant 0 : i32
    %c0_i32_0 = arith.constant 0 : i32
    %c0_i32_1 = arith.constant 0 : i32
    return %c0_i32, %c0_i32_0 : i32, i32
  }
}

module attributes {stable_mosaic.version = 11 : i64} {
  func.func @gconv_stats_kernel(%arg0: i32, %arg1: memref<1x8x8x8xf32, #tpu.memory_space<vmem>>, %arg2: memref<1x8xf32, #tpu.memory_space<vmem>>, %arg3: memref<1x8xf32, #tpu.memory_space<vmem>>, %arg4: memref<2x36x4xf32, #tpu.memory_space<vmem>>, %arg5: memref<1x8xf32, #tpu.memory_space<vmem>>, %arg6: memref<1x8x8x8xf32, #tpu.memory_space<vmem>>, %arg7: memref<2x8xf32, #tpu.memory_space<vmem>>, %arg8: memref<10x10x8xf32, #tpu.memory_space<vmem>>) attributes {dimension_semantics = [#tpu.dimension_semantics<arbitrary>], iteration_bounds = array<i64: 2>, scalar_prefetch = 0 : i64, scratch_operands = 1 : i64, tpu.core_type = #tpu.core_type<tc>, window_params = [{transform_indices = @transform_0, window_bounds = array<i64: 1, 8, 8, 8>}, {pipeline_mode = #tpu.pipeline_mode<synchronous>, transform_indices = @transform_1, window_bounds = array<i64: 1, 8>}, {pipeline_mode = #tpu.pipeline_mode<synchronous>, transform_indices = @transform_2, window_bounds = array<i64: 1, 8>}, {pipeline_mode = #tpu.pipeline_mode<synchronous>, transform_indices = @transform_3, window_bounds = array<i64: 2, 36, 4>}, {pipeline_mode = #tpu.pipeline_mode<synchronous>, transform_indices = @transform_4, window_bounds = array<i64: 1, 8>}, {transform_indices = @transform_5, window_bounds = array<i64: 1, 8, 8, 8>}, {pipeline_mode = #tpu.pipeline_mode<synchronous>, transform_indices = @transform_6, window_bounds = array<i64: 2, 8>}]} {
    %c0 = arith.constant 0 : index
    %c0_0 = arith.constant 0 : index
    %c0_1 = arith.constant 0 : index
    %c0_2 = arith.constant 0 : index
    %0 = vector.load %arg1[%c0, %c0_0, %c0_1, %c0_2] : memref<1x8x8x8xf32, #tpu.memory_space<vmem>>, vector<1x8x8x8xf32>
    %1 = vector.shape_cast %0 : vector<1x8x8x8xf32> to vector<8x8x8xf32>
    %c0_3 = arith.constant 0 : index
    %c0_4 = arith.constant 0 : index
    %2 = vector.load %arg2[%c0_3, %c0_4] : memref<1x8xf32, #tpu.memory_space<vmem>>, vector<1x8xf32>
    %3 = vector.shape_cast %2 : vector<1x8xf32> to vector<1x1x8xf32>
    %4 = vector.broadcast %3 : vector<1x1x8xf32> to vector<8x8x8xf32>
    %5 = arith.mulf %1, %4 : vector<8x8x8xf32>
    %c0_5 = arith.constant 0 : index
    %c0_6 = arith.constant 0 : index
    %6 = vector.load %arg3[%c0_5, %c0_6] : memref<1x8xf32, #tpu.memory_space<vmem>>, vector<1x8xf32>
    %7 = vector.shape_cast %6 : vector<1x8xf32> to vector<1x1x8xf32>
    %8 = vector.broadcast %7 : vector<1x1x8xf32> to vector<8x8x8xf32>
    %9 = arith.addf %5, %8 : vector<8x8x8xf32>
    %cst = arith.constant 0.000000e+00 : f32
    %10 = vector.broadcast %cst : f32 to vector<8x8x8xf32>
    %11 = arith.maximumf %9, %10 : vector<8x8x8xf32>
    %cst_7 = arith.constant 0.000000e+00 : f32
    %12 = vector.broadcast %cst_7 : f32 to vector<10x10x8xf32>
    %c0_8 = arith.constant 0 : index
    %c0_9 = arith.constant 0 : index
    %c0_10 = arith.constant 0 : index
    %13 = vector.load %arg8[%c0_8, %c0_9, %c0_10] : memref<10x10x8xf32, #tpu.memory_space<vmem>>, vector<10x10x8xf32>
    tpu.vector_store %arg8[%c0_8, %c0_9, %c0_10], %12 {strides = array<i32>} : memref<10x10x8xf32, #tpu.memory_space<vmem>>, vector<10x10x8xf32>,
    %c1 = arith.constant 1 : index
    %c1_11 = arith.constant 1 : index
    %c0_12 = arith.constant 0 : index
    %14 = vector.load %arg8[%c1, %c1_11, %c0_12] : memref<10x10x8xf32, #tpu.memory_space<vmem>>, vector<8x8x8xf32>
    tpu.vector_store %arg8[%c1, %c1_11, %c0_12], %11 {strides = array<i32>} : memref<10x10x8xf32, #tpu.memory_space<vmem>>, vector<8x8x8xf32>,
    %c0_13 = arith.constant 0 : index
    %c0_14 = arith.constant 0 : index
    %c0_15 = arith.constant 0 : index
    %15 = vector.load %arg8[%c0_13, %c0_14, %c0_15] : memref<10x10x8xf32, #tpu.memory_space<vmem>>, vector<8x8x4xf32>
    %c0_16 = arith.constant 0 : index
    %c1_17 = arith.constant 1 : index
    %c0_18 = arith.constant 0 : index
    %16 = vector.load %arg8[%c0_16, %c1_17, %c0_18] : memref<10x10x8xf32, #tpu.memory_space<vmem>>, vector<8x8x4xf32>
    %c0_19 = arith.constant 0 : index
    %c2 = arith.constant 2 : index
    %c0_20 = arith.constant 0 : index
    %17 = vector.load %arg8[%c0_19, %c2, %c0_20] : memref<10x10x8xf32, #tpu.memory_space<vmem>>, vector<8x8x4xf32>
    %c1_21 = arith.constant 1 : index
    %c0_22 = arith.constant 0 : index
    %c0_23 = arith.constant 0 : index
    %18 = vector.load %arg8[%c1_21, %c0_22, %c0_23] : memref<10x10x8xf32, #tpu.memory_space<vmem>>, vector<8x8x4xf32>
    %c1_24 = arith.constant 1 : index
    %c1_25 = arith.constant 1 : index
    %c0_26 = arith.constant 0 : index
    %19 = vector.load %arg8[%c1_24, %c1_25, %c0_26] : memref<10x10x8xf32, #tpu.memory_space<vmem>>, vector<8x8x4xf32>
    %c1_27 = arith.constant 1 : index
    %c2_28 = arith.constant 2 : index
    %c0_29 = arith.constant 0 : index
    %20 = vector.load %arg8[%c1_27, %c2_28, %c0_29] : memref<10x10x8xf32, #tpu.memory_space<vmem>>, vector<8x8x4xf32>
    %c2_30 = arith.constant 2 : index
    %c0_31 = arith.constant 0 : index
    %c0_32 = arith.constant 0 : index
    %21 = vector.load %arg8[%c2_30, %c0_31, %c0_32] : memref<10x10x8xf32, #tpu.memory_space<vmem>>, vector<8x8x4xf32>
    %c2_33 = arith.constant 2 : index
    %c1_34 = arith.constant 1 : index
    %c0_35 = arith.constant 0 : index
    %22 = vector.load %arg8[%c2_33, %c1_34, %c0_35] : memref<10x10x8xf32, #tpu.memory_space<vmem>>, vector<8x8x4xf32>
    %c2_36 = arith.constant 2 : index
    %c2_37 = arith.constant 2 : index
    %c0_38 = arith.constant 0 : index
    %23 = vector.load %arg8[%c2_36, %c2_37, %c0_38] : memref<10x10x8xf32, #tpu.memory_space<vmem>>, vector<8x8x4xf32>
    %24 = tpu.concatenate %15, %16, %17, %18, %19, %20, %21, %22, %23 in 2 : vector<8x8x4xf32>, vector<8x8x4xf32>, vector<8x8x4xf32>, vector<8x8x4xf32>, vector<8x8x4xf32>, vector<8x8x4xf32>, vector<8x8x4xf32>, vector<8x8x4xf32>, vector<8x8x4xf32> -> vector<8x8x36xf32>
    %25 = vector.shape_cast %24 : vector<8x8x36xf32> to vector<64x36xf32>
    %c0_39 = arith.constant 0 : index
    %c0_40 = arith.constant 0 : index
    %c0_41 = arith.constant 0 : index
    %26 = vector.load %arg4[%c0_39, %c0_40, %c0_41] : memref<2x36x4xf32, #tpu.memory_space<vmem>>, vector<1x36x4xf32>
    %27 = vector.shape_cast %26 : vector<1x36x4xf32> to vector<36x4xf32>
    %cst_42 = arith.constant dense<0.000000e+00> : vector<64x4xf32>
    %28 = tpu.matmul %25, %27, %cst_42 {dimension_numbers = #tpu.dot_dimension_numbers<[1], [0], [0], [1], [0, 0, 1, 1], [], []>} : vector<64x36xf32>, vector<36x4xf32>, vector<64x4xf32> -> vector<64x4xf32>
    %c0_43 = arith.constant 0 : index
    %c0_44 = arith.constant 0 : index
    %c4 = arith.constant 4 : index
    %29 = vector.load %arg8[%c0_43, %c0_44, %c4] : memref<10x10x8xf32, #tpu.memory_space<vmem>>, vector<8x8x4xf32>
    %c0_45 = arith.constant 0 : index
    %c1_46 = arith.constant 1 : index
    %c4_47 = arith.constant 4 : index
    %30 = vector.load %arg8[%c0_45, %c1_46, %c4_47] : memref<10x10x8xf32, #tpu.memory_space<vmem>>, vector<8x8x4xf32>
    %c0_48 = arith.constant 0 : index
    %c2_49 = arith.constant 2 : index
    %c4_50 = arith.constant 4 : index
    %31 = vector.load %arg8[%c0_48, %c2_49, %c4_50] : memref<10x10x8xf32, #tpu.memory_space<vmem>>, vector<8x8x4xf32>
    %c1_51 = arith.constant 1 : index
    %c0_52 = arith.constant 0 : index
    %c4_53 = arith.constant 4 : index
    %32 = vector.load %arg8[%c1_51, %c0_52, %c4_53] : memref<10x10x8xf32, #tpu.memory_space<vmem>>, vector<8x8x4xf32>
    %c1_54 = arith.constant 1 : index
    %c1_55 = arith.constant 1 : index
    %c4_56 = arith.constant 4 : index
    %33 = vector.load %arg8[%c1_54, %c1_55, %c4_56] : memref<10x10x8xf32, #tpu.memory_space<vmem>>, vector<8x8x4xf32>
    %c1_57 = arith.constant 1 : index
    %c2_58 = arith.constant 2 : index
    %c4_59 = arith.constant 4 : index
    %34 = vector.load %arg8[%c1_57, %c2_58, %c4_59] : memref<10x10x8xf32, #tpu.memory_space<vmem>>, vector<8x8x4xf32>
    %c2_60 = arith.constant 2 : index
    %c0_61 = arith.constant 0 : index
    %c4_62 = arith.constant 4 : index
    %35 = vector.load %arg8[%c2_60, %c0_61, %c4_62] : memref<10x10x8xf32, #tpu.memory_space<vmem>>, vector<8x8x4xf32>
    %c2_63 = arith.constant 2 : index
    %c1_64 = arith.constant 1 : index
    %c4_65 = arith.constant 4 : index
    %36 = vector.load %arg8[%c2_63, %c1_64, %c4_65] : memref<10x10x8xf32, #tpu.memory_space<vmem>>, vector<8x8x4xf32>
    %c2_66 = arith.constant 2 : index
    %c2_67 = arith.constant 2 : index
    %c4_68 = arith.constant 4 : index
    %37 = vector.load %arg8[%c2_66, %c2_67, %c4_68] : memref<10x10x8xf32, #tpu.memory_space<vmem>>, vector<8x8x4xf32>
    %38 = tpu.concatenate %29, %30, %31, %32, %33, %34, %35, %36, %37 in 2 : vector<8x8x4xf32>, vector<8x8x4xf32>, vector<8x8x4xf32>, vector<8x8x4xf32>, vector<8x8x4xf32>, vector<8x8x4xf32>, vector<8x8x4xf32>, vector<8x8x4xf32>, vector<8x8x4xf32> -> vector<8x8x36xf32>
    %39 = vector.shape_cast %38 : vector<8x8x36xf32> to vector<64x36xf32>
    %c1_69 = arith.constant 1 : index
    %c0_70 = arith.constant 0 : index
    %c0_71 = arith.constant 0 : index
    %40 = vector.load %arg4[%c1_69, %c0_70, %c0_71] : memref<2x36x4xf32, #tpu.memory_space<vmem>>, vector<1x36x4xf32>
    %41 = vector.shape_cast %40 : vector<1x36x4xf32> to vector<36x4xf32>
    %cst_72 = arith.constant dense<0.000000e+00> : vector<64x4xf32>
    %42 = tpu.matmul %39, %41, %cst_72 {dimension_numbers = #tpu.dot_dimension_numbers<[1], [0], [0], [1], [0, 0, 1, 1], [], []>} : vector<64x36xf32>, vector<36x4xf32>, vector<64x4xf32> -> vector<64x4xf32>
    %43 = tpu.concatenate %28, %42 in 1 : vector<64x4xf32>, vector<64x4xf32> -> vector<64x8xf32>
    %c0_73 = arith.constant 0 : index
    %c0_74 = arith.constant 0 : index
    %44 = vector.load %arg5[%c0_73, %c0_74] : memref<1x8xf32, #tpu.memory_space<vmem>>, vector<1x8xf32>
    %45 = vector.broadcast %44 : vector<1x8xf32> to vector<64x8xf32>
    %46 = arith.addf %43, %45 : vector<64x8xf32>
    %47 = vector.shape_cast %46 : vector<64x8xf32> to vector<1x8x8x8xf32>
    %c0_75 = arith.constant 0 : index
    %c0_76 = arith.constant 0 : index
    %c0_77 = arith.constant 0 : index
    %c0_78 = arith.constant 0 : index
    %48 = vector.load %arg6[%c0_75, %c0_76, %c0_77, %c0_78] : memref<1x8x8x8xf32, #tpu.memory_space<vmem>>, vector<1x8x8x8xf32>
    tpu.vector_store %arg6[%c0_75, %c0_76, %c0_77, %c0_78], %47 {strides = array<i32>} : memref<1x8x8x8xf32, #tpu.memory_space<vmem>>, vector<1x8x8x8xf32>,
    %cst_79 = arith.constant dense<0.000000e+00> : vector<8xf32>
    %49 = vector.multi_reduction <add>, %46, %cst_79 [0] : vector<64x8xf32> to vector<8xf32>
    %50 = vector.shape_cast %49 : vector<8xf32> to vector<1x8xf32>
    %51 = arith.mulf %46, %46 : vector<64x8xf32>
    %cst_80 = arith.constant dense<0.000000e+00> : vector<8xf32>
    %52 = vector.multi_reduction <add>, %51, %cst_80 [0] : vector<64x8xf32> to vector<8xf32>
    %53 = vector.shape_cast %52 : vector<8xf32> to vector<1x8xf32>
    %54 = tpu.concatenate %50, %53 in 0 : vector<1x8xf32>, vector<1x8xf32> -> vector<2x8xf32>
    %c0_i32 = arith.constant 0 : i32
    %55 = arith.cmpi eq, %arg0, %c0_i32 : i32
    %56 = arith.extui %55 : i1 to i32
    %c0_i32_81 = arith.constant 0 : i32
    %57 = arith.cmpi ne, %56, %c0_i32_81 : i32
    scf.if %57 {
      %cst_86 = arith.constant 0.000000e+00 : f32
      %61 = vector.broadcast %cst_86 : f32 to vector<2x8xf32>
      %c0_87 = arith.constant 0 : index
      %c0_88 = arith.constant 0 : index
      %62 = vector.load %arg7[%c0_87, %c0_88] : memref<2x8xf32, #tpu.memory_space<vmem>>, vector<2x8xf32>
      tpu.vector_store %arg7[%c0_87, %c0_88], %61 {strides = array<i32>} : memref<2x8xf32, #tpu.memory_space<vmem>>, vector<2x8xf32>,
    } else {
    }
    %c0_82 = arith.constant 0 : index
    %c0_83 = arith.constant 0 : index
    %58 = vector.load %arg7[%c0_82, %c0_83] : memref<2x8xf32, #tpu.memory_space<vmem>>, vector<2x8xf32>
    %59 = arith.addf %58, %54 : vector<2x8xf32>
    %c0_84 = arith.constant 0 : index
    %c0_85 = arith.constant 0 : index
    %60 = vector.load %arg7[%c0_84, %c0_85] : memref<2x8xf32, #tpu.memory_space<vmem>>, vector<2x8xf32>
    tpu.vector_store %arg7[%c0_84, %c0_85], %59 {strides = array<i32>} : memref<2x8xf32, #tpu.memory_space<vmem>>, vector<2x8xf32>,
    return
  }
  func.func @transform_0(%arg0: i32) -> (i32, i32, i32, i32) {
    %c0_i32 = arith.constant 0 : i32
    %c0_i32_0 = arith.constant 0 : i32
    %c0_i32_1 = arith.constant 0 : i32
    %c0_i32_2 = arith.constant 0 : i32
    return %arg0, %c0_i32, %c0_i32_0, %c0_i32_1 : i32, i32, i32, i32
  }
  func.func @transform_1(%arg0: i32) -> (i32, i32) {
    %c0_i32 = arith.constant 0 : i32
    %c0_i32_0 = arith.constant 0 : i32
    %c0_i32_1 = arith.constant 0 : i32
    return %c0_i32, %c0_i32_0 : i32, i32
  }
  func.func @transform_2(%arg0: i32) -> (i32, i32) {
    %c0_i32 = arith.constant 0 : i32
    %c0_i32_0 = arith.constant 0 : i32
    %c0_i32_1 = arith.constant 0 : i32
    return %c0_i32, %c0_i32_0 : i32, i32
  }
  func.func @transform_3(%arg0: i32) -> (i32, i32, i32) {
    %c0_i32 = arith.constant 0 : i32
    %c0_i32_0 = arith.constant 0 : i32
    %c0_i32_1 = arith.constant 0 : i32
    %c0_i32_2 = arith.constant 0 : i32
    return %c0_i32, %c0_i32_0, %c0_i32_1 : i32, i32, i32
  }
  func.func @transform_4(%arg0: i32) -> (i32, i32) {
    %c0_i32 = arith.constant 0 : i32
    %c0_i32_0 = arith.constant 0 : i32
    %c0_i32_1 = arith.constant 0 : i32
    return %c0_i32, %c0_i32_0 : i32, i32
  }
  func.func @transform_5(%arg0: i32) -> (i32, i32, i32, i32) {
    %c0_i32 = arith.constant 0 : i32
    %c0_i32_0 = arith.constant 0 : i32
    %c0_i32_1 = arith.constant 0 : i32
    %c0_i32_2 = arith.constant 0 : i32
    return %arg0, %c0_i32, %c0_i32_0, %c0_i32_1 : i32, i32, i32, i32
  }
  func.func @transform_6(%arg0: i32) -> (i32, i32) {
    %c0_i32 = arith.constant 0 : i32
    %c0_i32_0 = arith.constant 0 : i32
    %c0_i32_1 = arith.constant 0 : i32
    return %c0_i32, %c0_i32_0 : i32, i32
  }
}

module attributes {stable_mosaic.version = 11 : i64} {
  func.func @bn_add_relu_kernel(%arg0: i32, %arg1: memref<16x128xf32, #tpu.memory_space<vmem>>, %arg2: memref<16x128xf32, #tpu.memory_space<vmem>>, %arg3: memref<1x128xf32, #tpu.memory_space<vmem>>, %arg4: memref<1x128xf32, #tpu.memory_space<vmem>>, %arg5: memref<16x128xf32, #tpu.memory_space<vmem>>) attributes {dimension_semantics = [#tpu.dimension_semantics<parallel>], iteration_bounds = array<i64: 1>, scalar_prefetch = 0 : i64, scratch_operands = 0 : i64, tpu.core_type = #tpu.core_type<tc>, window_params = [{transform_indices = @transform_0, window_bounds = array<i64: 16, 128>}, {transform_indices = @transform_1, window_bounds = array<i64: 16, 128>}, {pipeline_mode = #tpu.pipeline_mode<synchronous>, transform_indices = @transform_2, window_bounds = array<i64: 1, 128>}, {pipeline_mode = #tpu.pipeline_mode<synchronous>, transform_indices = @transform_3, window_bounds = array<i64: 1, 128>}, {transform_indices = @transform_4, window_bounds = array<i64: 16, 128>}]} {
    %c0 = arith.constant 0 : index
    %c0_0 = arith.constant 0 : index
    %0 = vector.load %arg1[%c0, %c0_0] : memref<16x128xf32, #tpu.memory_space<vmem>>, vector<16x128xf32>
    %c0_1 = arith.constant 0 : index
    %c0_2 = arith.constant 0 : index
    %1 = vector.load %arg2[%c0_1, %c0_2] : memref<16x128xf32, #tpu.memory_space<vmem>>, vector<16x128xf32>
    %c0_3 = arith.constant 0 : index
    %c0_4 = arith.constant 0 : index
    %2 = vector.load %arg3[%c0_3, %c0_4] : memref<1x128xf32, #tpu.memory_space<vmem>>, vector<1x128xf32>
    %3 = vector.broadcast %2 : vector<1x128xf32> to vector<16x128xf32>
    %4 = arith.mulf %1, %3 : vector<16x128xf32>
    %5 = arith.addf %0, %4 : vector<16x128xf32>
    %c0_5 = arith.constant 0 : index
    %c0_6 = arith.constant 0 : index
    %6 = vector.load %arg4[%c0_5, %c0_6] : memref<1x128xf32, #tpu.memory_space<vmem>>, vector<1x128xf32>
    %7 = vector.broadcast %6 : vector<1x128xf32> to vector<16x128xf32>
    %8 = arith.addf %5, %7 : vector<16x128xf32>
    %cst = arith.constant 0.000000e+00 : f32
    %9 = vector.broadcast %cst : f32 to vector<16x128xf32>
    %10 = arith.maximumf %8, %9 : vector<16x128xf32>
    %c0_7 = arith.constant 0 : index
    %c0_8 = arith.constant 0 : index
    %11 = vector.load %arg5[%c0_7, %c0_8] : memref<16x128xf32, #tpu.memory_space<vmem>>, vector<16x128xf32>
    tpu.vector_store %arg5[%c0_7, %c0_8], %10 {strides = array<i32>} : memref<16x128xf32, #tpu.memory_space<vmem>>, vector<16x128xf32>,
    return
  }
  func.func @transform_0(%arg0: i32) -> (i32, i32) {
    %c0_i32 = arith.constant 0 : i32
    %c0_i32_0 = arith.constant 0 : i32
    return %arg0, %c0_i32 : i32, i32
  }
  func.func @transform_1(%arg0: i32) -> (i32, i32) {
    %c0_i32 = arith.constant 0 : i32
    %c0_i32_0 = arith.constant 0 : i32
    return %arg0, %c0_i32 : i32, i32
  }
  func.func @transform_2(%arg0: i32) -> (i32, i32) {
    %c0_i32 = arith.constant 0 : i32
    %c0_i32_0 = arith.constant 0 : i32
    %c0_i32_1 = arith.constant 0 : i32
    return %c0_i32, %c0_i32_0 : i32, i32
  }
  func.func @transform_3(%arg0: i32) -> (i32, i32) {
    %c0_i32 = arith.constant 0 : i32
    %c0_i32_0 = arith.constant 0 : i32
    %c0_i32_1 = arith.constant 0 : i32
    return %c0_i32, %c0_i32_0 : i32, i32
  }
  func.func @transform_4(%arg0: i32) -> (i32, i32) {
    %c0_i32 = arith.constant 0 : i32
    %c0_i32_0 = arith.constant 0 : i32
    return %arg0, %c0_i32 : i32, i32
  }
}

</mosaic_0001>

<llo_original>
// kernel: tile.10
$region0: #{tile.10}
  #allocation0 [shape = 's32[1]{0}', space=sflag, size = 0x4, scoped, tag = 'scoped memory for tile.10']
  %s0 = inlined_call_operand.vmem [shape: f32[16], index: 0, kind: input, shape index: {}]
  %s1 = inlined_call_operand.vmem [shape: f32[8,16], index: 1, kind: output, shape index: {}]
  // Predicated region
  $region2: #{tile.10} parent=0 // pred_check
    _
  $region3: #{tile.10} parent=0 // pred_check_branch
    %3 = sbr.rel (0) target = $region5
  $region4: #{tile.10} parent=0 // pred_region
    _
  $region5: #{tile.10} parent=0 // pred_fallthru
    _
  %v4 = vld [vmem:[%s0] ss:$0 sm:$0xff]
  %5 = vst [vmem:[%s1] sm:$0xff] %v4

// kernel: tile.11
$region0: #{tile.11}
  %s0 = inlined_call_operand.vmem [shape: f32[8,16], index: 0, kind: input, shape index: {}]
  %s1 = inlined_call_operand.vmem [shape: f32[1,128], index: 1, kind: output, shape index: {}]
  $region1: #{tile.11} parent=0
    #allocation0 [shape = 'u8[4096]{0}', space=vmem, size = 0x1000, scoped, tag = 'scoped mem for output reshape']
    %v2 = vld [vmem:[%s0] sm:$0x1]
    %vm3 = vcmask 130048
    %4 = vst.msk [vmem:[#allocation0] sm:$0x1] %vm3, %v2
    %s5 = scalar_lea.vmem %s0, 7
    %v6 = vld [vmem:[%s5] sm:$0x1]
    %7 = vrot.lane.b32.xlu0 %v6, 112
    %v8 = vpop.permute.xlu0 %7
    %vm9 = vcmask 1048448
    %10 = vst.msk [vmem:[#allocation0] sm:$0x1] %vm9, %v8
    %s11 = scalar_lea.vmem %s0, 6
    %v12 = vld [vmem:[%s11] sm:$0x1]
    %13 = vrot.lane.b32.xlu0 %v12, 96
    %v14 = vpop.permute.xlu0 %13
    %vm15 = vcmask 917248
    %16 = vst.msk [vmem:[#allocation0] sm:$0x1] %vm15, %v14
    %s17 = scalar_lea.vmem %s0, 5
    %v18 = vld [vmem:[%s17] sm:$0x1]
    %19 = vrot.lane.b32.xlu0 %v18, 80
    %v20 = vpop.permute.xlu0 %19
    %vm21 = vcmask 786048
    %22 = vst.msk [vmem:[#allocation0] sm:$0x1] %vm21, %v20
    %s23 = scalar_lea.vmem %s0, 4
    %v24 = vld [vmem:[%s23] sm:$0x1]
    %25 = vrot.lane.b32.xlu0 %v24, 64
    %v26 = vpop.permute.xlu0 %25
    %vm27 = vcmask 654848
    %28 = vst.msk [vmem:[#allocation0] sm:$0x1] %vm27, %v26
    %s29 = scalar_lea.vmem %s0, 3
    %v30 = vld [vmem:[%s29] sm:$0x1]
    %31 = vrot.lane.b32.xlu0 %v30, 48
    %v32 = vpop.permute.xlu0 %31
    %vm33 = vcmask 523648
    %34 = vst.msk [vmem:[#allocation0] sm:$0x1] %vm33, %v32
    %s35 = scalar_lea.vmem %s0, 2
    %v36 = vld [vmem:[%s35] sm:$0x1]
    %37 = vrot.lane.b32.xlu0 %v36, 32
    %v38 = vpop.permute.xlu0 %37
    %vm39 = vcmask 392448
    %40 = vst.msk [vmem:[#allocation0] sm:$0x1] %vm39, %v38
    %s41 = scalar_lea.vmem %s0, 1
    %v42 = vld [vmem:[%s41] sm:$0x1]
    %43 = vrot.lane.b32.xlu0 %v42, 16
    %v44 = vpop.permute.xlu0 %43
    %vm45 = vcmask 261248
    %46 = vst.msk [vmem:[#allocation0] sm:$0x1] %vm45, %v44
    %s48 = ssub.s32 2, 1
    %v49 = vld [vmem:[#allocation0] sm:%s48]
    %s51 = ssub.s32 2, 1
    %52 = vst [vmem:[%s1] sm:%s51] %v49

// kernel: residual_block_forward.4
$region0: #{residual_block_forward.4}
  #allocation0 [shape = 'u32[]', space=smem, size = 0x4, offset = 0x4, fixed_abs, tag = 'smem constant byte address 0x4 - core index']
  #allocation1 [shape = 'u32[72,128]{1,0:T(1,128)}', space=vmem, size = 0x9000, scoped, tag = 'internal scratch']
  %s0 = inlined_call_operand.hbm [shape: f32[128,16], index: 0, kind: input, shape index: {}]
  %s1 = inlined_call_operand.vmem [shape: f32[16,8], index: 1, kind: input, shape index: {}]
  %s2 = inlined_call_operand.vmem [shape: f32[1,8], index: 2, kind: input, shape index: {}]
  %s3 = inlined_call_operand.vmem [shape: f32[128,8], index: 3, kind: output, shape index: {0}]
  %s4 = inlined_call_operand.vmem [shape: f32[2,8], index: 4, kind: output, shape index: {1}]
  %5 = xla_tuple %s3, %s4
  %s6 = sld [smem:[#allocation0]]
  $region38: #{residual_block_forward.4} parent=0
    _
  %s8 = ssub.s32 1, %s6
  %s9 = scalar_select 0, %s8, %s6
  $region1: #{residual_block_forward.4} parent=0
    #allocation2 [shape = 'u8[65536]{0}', space=vmem, size = 0x10000, scoped, tag = 'input window, operand 0, single buffered']
    #allocation3 [shape = 's32[1]{0}', space=sflag, size = 0x4, scoped, tag = 'scoped memory for residual_block_forward.4']
    %10 = vsyncpa [#allocation3], 0
    // Predicated region
    $region2: #{residual_block_forward.4} parent=1 // pred_check
      _
    $region3: #{residual_block_forward.4} parent=1 // pred_check_branch
      %12 = sbr.rel (0) target = $region5
    $region4: #{residual_block_forward.4} parent=1 // pred_region
      %14 = vsyncadd [#allocation3], 0
      %s15 = sshll.u32 %s0, 4
      %s16 = int_to_ptr.hbm [resolvable:$true] %s15
      %s17 = sshll.u32 [#allocation2], 4
      %s18 = int_to_ptr.vmem [resolvable:$true] %s17
      %23 = dma.hbm_to_vmem [thread:$0]  %s16, 2048, %s18, [#allocation3], 128, 128, 8
    $region5: #{residual_block_forward.4} parent=1 // pred_fallthru
      _
    // Predicated region
    $region6: #{residual_block_forward.4} parent=1 // pred_check
      _
    $region7: #{residual_block_forward.4} parent=1 // pred_check_branch
      %25 = sbr.rel (0) target = $region9
    $region8: #{residual_block_forward.4} parent=1 // pred_region
      _
    $region9: #{residual_block_forward.4} parent=1 // pred_fallthru
      _
    // Predicated region
    $region10: #{residual_block_forward.4} parent=1 // pred_check
      _
    $region11: #{residual_block_forward.4} parent=1 // pred_check_branch
      %27 = sbr.rel (0) target = $region13
    $region12: #{residual_block_forward.4} parent=1 // pred_region
      _
    $region13: #{residual_block_forward.4} parent=1 // pred_fallthru
      _
    // Predicated region
    $region14: #{residual_block_forward.4} parent=1 // pred_check
      _
    $region15: #{residual_block_forward.4} parent=1 // pred_check_branch
      %29 = sbr.rel (0) target = $region17
    $region16: #{residual_block_forward.4} parent=1 // pred_region
      %31 = dma.done [#allocation3], 2048
    $region17: #{residual_block_forward.4} parent=1 // pred_fallthru
      _
    %v32 = vld [vmem:[#allocation2] sm:$0xff]
    %v33 = vld [vmem:[#allocation2 + $0x8] sm:$0xff]
    %v34 = vld [vmem:[#allocation2 + $0x10] sm:$0xff]
    %v35 = vld [vmem:[#allocation2 + $0x18] sm:$0xff]
    %v36 = vld [vmem:[#allocation2 + $0x20] sm:$0xff]
    %v37 = vld [vmem:[#allocation2 + $0x28] sm:$0xff]
    %v38 = vld [vmem:[#allocation2 + $0x30] sm:$0xff]
    %v39 = vld [vmem:[#allocation2 + $0x38] sm:$0xff]
    %v40 = vld [vmem:[#allocation2 + $0x40] sm:$0xff]
    %v41 = vld [vmem:[#allocation2 + $0x48] sm:$0xff]
    %v42 = vld [vmem:[#allocation2 + $0x50] sm:$0xff]
    %v43 = vld [vmem:[#allocation2 + $0x58] sm:$0xff]
    %v44 = vld [vmem:[#allocation2 + $0x60] sm:$0xff]
    %v45 = vld [vmem:[#allocation2 + $0x68] sm:$0xff]
    %v46 = vld [vmem:[#allocation2 + $0x70] sm:$0xff]
    %v47 = vld [vmem:[#allocation2 + $0x78] sm:$0xff]
    %v48 = vld [vmem:[%s1] sm:$0xff]
    %v49 = vld [vmem:[%s1 + $0x8] sm:$0xff]
    %v50 = vld [vmem:[%s2] sm:$0x1]
    %v52 = vperm.slane %v50, 0
    %vm54 = vcmask 130048
    %v56 = vsel %vm54, %v32, 0
    %v59 = vsel %vm54, %v33, 0
    %v62 = vsel %vm54, %v34, 0
    %v65 = vsel %vm54, %v35, 0
    %v68 = vsel %vm54, %v36, 0
    %v71 = vsel %vm54, %v37, 0
    %v74 = vsel %vm54, %v38, 0
    %v77 = vsel %vm54, %v39, 0
    %v80 = vsel %vm54, %v40, 0
    %v83 = vsel %vm54, %v41, 0
    %v86 = vsel %vm54, %v42, 0
    %v89 = vsel %vm54, %v43, 0
    %v92 = vsel %vm54, %v44, 0
    %v95 = vsel %vm54, %v45, 0
    %v98 = vsel %vm54, %v46, 0
    %v101 = vsel %vm54, %v47, 0
    %103 = vmatpush.msra.mxu0 0.0
    %104 = vmatpush.msra.mxu0 0.0
    %105 = vmatpush.msra.mxu0 0.0
    %106 = vmatpush.msra.mxu0 0.0
    %107 = vmatpush.msra.mxu0 0.0
    %108 = vmatpush.msra.mxu0 0.0
    %109 = vmatpush.msra.mxu0 0.0
    %110 = vmatpush.msra.mxu0 0.0
    %111 = vmatpush.msra.mxu0 0.0
    %112 = vmatpush.msra.mxu0 0.0
    %113 = vmatpush.msra.mxu0 0.0
    %114 = vmatpush.msra.mxu0 0.0
    %115 = vmatpush.msra.mxu0 0.0
    %116 = vmatpush.msra.mxu0 0.0
    %117 = vmatpush.msra.mxu0 %v49
    %118 = vmatpush.msra.mxu0 %v48
    %119 = vmatmul.f32.gmra.mxu0 %v56
    %v120 = vpop.f32.mrf.mxu0
    %v121 = vadd.f32 %v52, %v120
    %122 = vmatmul.f32.gmra.mxu0 %v59
    %v123 = vpop.f32.mrf.mxu0
    %v124 = vadd.f32 %v52, %v123
    %125 = vmatmul.f32.gmra.mxu0 %v62
    %v126 = vpop.f32.mrf.mxu0
    %v127 = vadd.f32 %v52, %v126
    %128 = vmatmul.f32.gmra.mxu0 %v65
    %v129 = vpop.f32.mrf.mxu0
    %v130 = vadd.f32 %v52, %v129
    %131 = vmatmul.f32.gmra.mxu0 %v68
    %v132 = vpop.f32.mrf.mxu0
    %v133 = vadd.f32 %v52, %v132
    %134 = vmatmul.f32.gmra.mxu0 %v71
    %v135 = vpop.f32.mrf.mxu0
    %v136 = vadd.f32 %v52, %v135
    %137 = vmatmul.f32.gmra.mxu0 %v74
    %v138 = vpop.f32.mrf.mxu0
    %v139 = vadd.f32 %v52, %v138
    %140 = vmatmul.f32.gmra.mxu0 %v77
    %v141 = vpop.f32.mrf.mxu0
    %v142 = vadd.f32 %v52, %v141
    %143 = vmatmul.f32.gmra.mxu0 %v80
    %v144 = vpop.f32.mrf.mxu0
    %v145 = vadd.f32 %v52, %v144
    %146 = vmatmul.f32.gmra.mxu0 %v83
    %v147 = vpop.f32.mrf.mxu0
    %v148 = vadd.f32 %v52, %v147
    %149 = vmatmul.f32.gmra.mxu0 %v86
    %v150 = vpop.f32.mrf.mxu0
    %v151 = vadd.f32 %v52, %v150
    %152 = vmatmul.f32.gmra.mxu0 %v89
    %v153 = vpop.f32.mrf.mxu0
    %v154 = vadd.f32 %v52, %v153
    %155 = vmatmul.f32.gmra.mxu0 %v92
    %v156 = vpop.f32.mrf.mxu0
    %v157 = vadd.f32 %v52, %v156
    %158 = vmatmul.f32.gmra.mxu0 %v95
    %v159 = vpop.f32.mrf.mxu0
    %v160 = vadd.f32 %v52, %v159
    %161 = vmatmul.f32.gmra.mxu0 %v98
    %v162 = vpop.f32.mrf.mxu0
    %v163 = vadd.f32 %v52, %v162
    %164 = vmatmul.f32.gmra.mxu0 %v101
    %v165 = vpop.f32.mrf.mxu0
    %v166 = vadd.f32 %v52, %v165
    %167 = vdwg.mxu0
    %vm168 = vcmask 64512
    %169 = vst.msk [vmem:[%s3] sm:$0xff] %vm168, %v121
    %170 = vst.msk [vmem:[%s3 + $0x8] sm:$0xff] %vm168, %v124
    %171 = vst.msk [vmem:[%s3 + $0x10] sm:$0xff] %vm168, %v127
    %172 = vst.msk [vmem:[%s3 + $0x18] sm:$0xff] %vm168, %v130
    %173 = vst.msk [vmem:[%s3 + $0x20] sm:$0xff] %vm168, %v133
    %174 = vst.msk [vmem:[%s3 + $0x28] sm:$0xff] %vm168, %v136
    %175 = vst.msk [vmem:[%s3 + $0x30] sm:$0xff] %vm168, %v139
    %176 = vst.msk [vmem:[%s3 + $0x38] sm:$0xff] %vm168, %v142
    %177 = vst.msk [vmem:[%s3 + $0x40] sm:$0xff] %vm168, %v145
    %178 = vst.msk [vmem:[%s3 + $0x48] sm:$0xff] %vm168, %v148
    %179 = vst.msk [vmem:[%s3 + $0x50] sm:$0xff] %vm168, %v151
    %180 = vst.msk [vmem:[%s3 + $0x58] sm:$0xff] %vm168, %v154
    %181 = vst.msk [vmem:[%s3 + $0x60] sm:$0xff] %vm168, %v157
    %182 = vst.msk [vmem:[%s3 + $0x68] sm:$0xff] %vm168, %v160
    %183 = vst.msk [vmem:[%s3 + $0x70] sm:$0xff] %vm168, %v163
    %184 = vst.msk [vmem:[%s3 + $0x78] sm:$0xff] %vm168, %v166
    %v185 = vsel %vm168, %v121, 0.0
    %v186 = vsel %vm168, %v124, 0.0
    %v187 = vadd.f32 %v185, %v186
    %v188 = vsel %vm168, %v127, 0.0
    %v189 = vadd.f32 %v187, %v188
    %v190 = vsel %vm168, %v130, 0.0
    %v191 = vadd.f32 %v189, %v190
    %v192 = vsel %vm168, %v133, 0.0
    %v193 = vadd.f32 %v191, %v192
    %v194 = vsel %vm168, %v136, 0.0
    %v195 = vadd.f32 %v193, %v194
    %v196 = vsel %vm168, %v139, 0.0
    %v197 = vadd.f32 %v195, %v196
    %v198 = vsel %vm168, %v142, 0.0
    %v199 = vadd.f32 %v197, %v198
    %v200 = vsel %vm168, %v145, 0.0
    %v201 = vadd.f32 %v199, %v200
    %v202 = vsel %vm168, %v148, 0.0
    %v203 = vadd.f32 %v201, %v202
    %v204 = vsel %vm168, %v151, 0.0
    %v205 = vadd.f32 %v203, %v204
    %v206 = vsel %vm168, %v154, 0.0
    %v207 = vadd.f32 %v205, %v206
    %v208 = vsel %vm168, %v157, 0.0
    %v209 = vadd.f32 %v207, %v208
    %v210 = vsel %vm168, %v160, 0.0
    %v211 = vadd.f32 %v209, %v210
    %v212 = vsel %vm168, %v163, 0.0
    %v213 = vadd.f32 %v211, %v212
    %v214 = vsel %vm168, %v166, 0.0
    %v215 = vadd.f32 %v213, %v214
    %v216 = vrot.slane %v215, 4
    %v217 = vadd.f32 %v215, %v216
    %v218 = vrot.slane %v217, 2
    %v219 = vadd.f32 %v217, %v218
    %v220 = vrot.slane %v219, 1
    %v221 = vadd.f32 %v219, %v220
    %v222 = vmul.f32 %v121, %v121
    %v223 = vmul.f32 %v124, %v124
    %v224 = vmul.f32 %v127, %v127
    %v225 = vmul.f32 %v130, %v130
    %v226 = vmul.f32 %v133, %v133
    %v227 = vmul.f32 %v136, %v136
    %v228 = vmul.f32 %v139, %v139
    %v229 = vmul.f32 %v142, %v142
    %v230 = vmul.f32 %v145, %v145
    %v231 = vmul.f32 %v148, %v148
    %v232 = vmul.f32 %v151, %v151
    %v233 = vmul.f32 %v154, %v154
    %v234 = vmul.f32 %v157, %v157
    %v235 = vmul.f32 %v160, %v160
    %v236 = vmul.f32 %v163, %v163
    %v237 = vmul.f32 %v166, %v166
    %v238 = vsel %vm168, %v222, 0.0
    %v239 = vsel %vm168, %v223, 0.0
    %v240 = vadd.f32 %v238, %v239
    %v241 = vsel %vm168, %v224, 0.0
    %v242 = vadd.f32 %v240, %v241
    %v243 = vsel %vm168, %v225, 0.0
    %v244 = vadd.f32 %v242, %v243
    %v245 = vsel %vm168, %v226, 0.0
    %v246 = vadd.f32 %v244, %v245
    %v247 = vsel %vm168, %v227, 0.0
    %v248 = vadd.f32 %v246, %v247
    %v249 = vsel %vm168, %v228, 0.0
    %v250 = vadd.f32 %v248, %v249
    %v251 = vsel %vm168, %v229, 0.0
    %v252 = vadd.f32 %v250, %v251
    %v253 = vsel %vm168, %v230, 0.0
    %v254 = vadd.f32 %v252, %v253
    %v255 = vsel %vm168, %v231, 0.0
    %v256 = vadd.f32 %v254, %v255
    %v257 = vsel %vm168, %v232, 0.0
    %v258 = vadd.f32 %v256, %v257
    %v259 = vsel %vm168, %v233, 0.0
    %v260 = vadd.f32 %v258, %v259
    %v261 = vsel %vm168, %v234, 0.0
    %v262 = vadd.f32 %v260, %v261
    %v263 = vsel %vm168, %v235, 0.0
    %v264 = vadd.f32 %v262, %v263
    %v265 = vsel %vm168, %v236, 0.0
    %v266 = vadd.f32 %v264, %v265
    %v267 = vsel %vm168, %v237, 0.0
    %v268 = vadd.f32 %v266, %v267
    %v269 = vrot.slane %v268, 4
    %v270 = vadd.f32 %v268, %v269
    %v271 = vrot.slane %v270, 2
    %v272 = vadd.f32 %v270, %v271
    %v273 = vrot.slane %v272, 1
    %v274 = vadd.f32 %v272, %v273
    %vm275 = vcmask 1040384
    %v276 = vsel %vm275, %v221, %v274
    %p277 = scmp.eq.s32.totalorder 0, 0
    // Predicated region
    $region18: #{residual_block_forward.4} parent=1 // pred_check
      %p278 = pneg %p277
    $region19: #{residual_block_forward.4} parent=1 // pred_check_branch
      %280 = sbr.rel (%p278) target = $region21
    $region20: #{residual_block_forward.4} parent=1 // pred_region
      %vm281 = vcmask 58368
      %282 = vst.msk [vmem:[%s4] sm:$0x3] %vm281, 0.0
    $region21: #{residual_block_forward.4} parent=1 // pred_fallthru
      _
    %v283 = vld [vmem:[%s4] sm:$0x3]
    %v284 = vadd.f32 %v283, %v276
    %vm285 = vcmask 58368
    %286 = vst.msk [vmem:[%s4] sm:$0x3] %vm285, %v284
    // Predicated region
    $region22: #{residual_block_forward.4} parent=1 // pred_check
      _
    $region23: #{residual_block_forward.4} parent=1 // pred_check_branch
      %288 = sbr.rel (0) target = $region25
    $region24: #{residual_block_forward.4} parent=1 // pred_region
      _
    $region25: #{residual_block_forward.4} parent=1 // pred_fallthru
      _
    // Predicated region
    $region26: #{residual_block_forward.4} parent=1 // pred_check
      _
    $region27: #{residual_block_forward.4} parent=1 // pred_check_branch
      %290 = sbr.rel (0) target = $region29
    $region28: #{residual_block_forward.4} parent=1 // pred_region
      _
    $region29: #{residual_block_forward.4} parent=1 // pred_fallthru
      _
    // Predicated region
    $region30: #{residual_block_forward.4} parent=1 // pred_check
      _
    $region31: #{residual_block_forward.4} parent=1 // pred_check_branch
      %292 = sbr.rel (0) target = $region33
    $region32: #{residual_block_forward.4} parent=1 // pred_region
      _
    $region33: #{residual_block_forward.4} parent=1 // pred_fallthru
      _
    // Predicated region
    $region34: #{residual_block_forward.4} parent=1 // pred_check
      _
    $region35: #{residual_block_forward.4} parent=1 // pred_check_branch
      %294 = sbr.rel (0) target = $region37
    $region36: #{residual_block_forward.4} parent=1 // pred_region
      _
    $region37: #{residual_block_forward.4} parent=1 // pred_fallthru
      _
    %295 = vsyncpa [#allocation3], 1

// kernel: residual_block_forward.6
$region0: #{residual_block_forward.6}
  #allocation0 [shape = 'u32[]', space=smem, size = 0x4, offset = 0x4, fixed_abs, tag = 'smem constant byte address 0x4 - core index']
  #allocation1 [shape = 'u32[72,128]{1,0:T(1,128)}', space=vmem, size = 0x9000, scoped, tag = 'internal scratch']
  %s0 = inlined_call_operand.vmem [shape: f32[128,8], index: 0, kind: input, shape index: {}]
  %s1 = inlined_call_operand.vmem [shape: f32[1,8], index: 1, kind: input, shape index: {}]
  %s2 = inlined_call_operand.vmem [shape: f32[1,8], index: 2, kind: input, shape index: {}]
  %s3 = inlined_call_operand.vmem [shape: f32[8,16], index: 3, kind: input, shape index: {}]
  %s4 = inlined_call_operand.vmem [shape: f32[1,16], index: 4, kind: input, shape index: {}]
  %s5 = inlined_call_operand.vmem [shape: f32[128,16], index: 5, kind: output, shape index: {0}]
  %s6 = inlined_call_operand.vmem [shape: f32[2,16], index: 6, kind: output, shape index: {1}]
  %7 = xla_tuple %s5, %s6
  %s8 = sld [smem:[#allocation0]]
  $region42: #{residual_block_forward.6} parent=0
    _
  %s10 = ssub.s32 1, %s8
  %s11 = scalar_select 0, %s10, %s8
  // Predicated region
  $region2: #{residual_block_forward.6} parent=0 // pred_check
    _
  $region3: #{residual_block_forward.6} parent=0 // pred_check_branch
    %13 = sbr.rel (0) target = $region5
  $region4: #{residual_block_forward.6} parent=0 // pred_region
    _
  $region5: #{residual_block_forward.6} parent=0 // pred_fallthru
    _
  // Predicated region
  $region6: #{residual_block_forward.6} parent=0 // pred_check
    _
  $region7: #{residual_block_forward.6} parent=0 // pred_check_branch
    %15 = sbr.rel (0) target = $region9
  $region8: #{residual_block_forward.6} parent=0 // pred_region
    _
  $region9: #{residual_block_forward.6} parent=0 // pred_fallthru
    _
  // Predicated region
  $region10: #{residual_block_forward.6} parent=0 // pred_check
    _
  $region11: #{residual_block_forward.6} parent=0 // pred_check_branch
    %17 = sbr.rel (0) target = $region13
  $region12: #{residual_block_forward.6} parent=0 // pred_region
    _
  $region13: #{residual_block_forward.6} parent=0 // pred_fallthru
    _
  // Predicated region
  $region14: #{residual_block_forward.6} parent=0 // pred_check
    _
  $region15: #{residual_block_forward.6} parent=0 // pred_check_branch
    %19 = sbr.rel (0) target = $region17
  $region16: #{residual_block_forward.6} parent=0 // pred_region
    _
  $region17: #{residual_block_forward.6} parent=0 // pred_fallthru
    _
  // Predicated region
  $region18: #{residual_block_forward.6} parent=0 // pred_check
    _
  $region19: #{residual_block_forward.6} parent=0 // pred_check_branch
    %21 = sbr.rel (0) target = $region21
  $region20: #{residual_block_forward.6} parent=0 // pred_region
    _
  $region21: #{residual_block_forward.6} parent=0 // pred_fallthru
    _
  %v22 = vld [vmem:[%s0] sm:$0xff]
  %v23 = vld [vmem:[%s0 + $0x8] sm:$0xff]
  %v24 = vld [vmem:[%s0 + $0x10] sm:$0xff]
  %v25 = vld [vmem:[%s0 + $0x18] sm:$0xff]
  %v26 = vld [vmem:[%s0 + $0x20] sm:$0xff]
  %v27 = vld [vmem:[%s0 + $0x28] sm:$0xff]
  %v28 = vld [vmem:[%s0 + $0x30] sm:$0xff]
  %v29 = vld [vmem:[%s0 + $0x38] sm:$0xff]
  %v30 = vld [vmem:[%s0 + $0x40] sm:$0xff]
  %v31 = vld [vmem:[%s0 + $0x48] sm:$0xff]
  %v32 = vld [vmem:[%s0 + $0x50] sm:$0xff]
  %v33 = vld [vmem:[%s0 + $0x58] sm:$0xff]
  %v34 = vld [vmem:[%s0 + $0x60] sm:$0xff]
  %v35 = vld [vmem:[%s0 + $0x68] sm:$0xff]
  %v36 = vld [vmem:[%s0 + $0x70] sm:$0xff]
  %v37 = vld [vmem:[%s0 + $0x78] sm:$0xff]
  %v38 = vld [vmem:[%s1] sm:$0x1]
  %v40 = vperm.slane %v38, 0
  %v42 = vmul.f32 %v22, %v40
  %v43 = vmul.f32 %v23, %v40
  %v44 = vmul.f32 %v24, %v40
  %v45 = vmul.f32 %v25, %v40
  %v46 = vmul.f32 %v26, %v40
  %v47 = vmul.f32 %v27, %v40
  %v48 = vmul.f32 %v28, %v40
  %v49 = vmul.f32 %v29, %v40
  %v50 = vmul.f32 %v30, %v40
  %v51 = vmul.f32 %v31, %v40
  %v52 = vmul.f32 %v32, %v40
  %v53 = vmul.f32 %v33, %v40
  %v54 = vmul.f32 %v34, %v40
  %v55 = vmul.f32 %v35, %v40
  %v56 = vmul.f32 %v36, %v40
  %v57 = vmul.f32 %v37, %v40
  %v58 = vld [vmem:[%s2] sm:$0x1]
  %v60 = vperm.slane %v58, 0
  %v62 = vadd.f32 %v42, %v60
  %v63 = vadd.f32 %v43, %v60
  %v64 = vadd.f32 %v44, %v60
  %v65 = vadd.f32 %v45, %v60
  %v66 = vadd.f32 %v46, %v60
  %v67 = vadd.f32 %v47, %v60
  %v68 = vadd.f32 %v48, %v60
  %v69 = vadd.f32 %v49, %v60
  %v70 = vadd.f32 %v50, %v60
  %v71 = vadd.f32 %v51, %v60
  %v72 = vadd.f32 %v52, %v60
  %v73 = vadd.f32 %v53, %v60
  %v74 = vadd.f32 %v54, %v60
  %v75 = vadd.f32 %v55, %v60
  %v76 = vadd.f32 %v56, %v60
  %v77 = vadd.f32 %v57, %v60
  %v78 = vmax.f32 %v62, 0.0
  %v79 = vmax.f32 %v63, 0.0
  %v80 = vmax.f32 %v64, 0.0
  %v81 = vmax.f32 %v65, 0.0
  %v82 = vmax.f32 %v66, 0.0
  %v83 = vmax.f32 %v67, 0.0
  %v84 = vmax.f32 %v68, 0.0
  %v85 = vmax.f32 %v69, 0.0
  %v86 = vmax.f32 %v70, 0.0
  %v87 = vmax.f32 %v71, 0.0
  %v88 = vmax.f32 %v72, 0.0
  %v89 = vmax.f32 %v73, 0.0
  %v90 = vmax.f32 %v74, 0.0
  %v91 = vmax.f32 %v75, 0.0
  %v92 = vmax.f32 %v76, 0.0
  %v93 = vmax.f32 %v77, 0.0
  %v94 = vld [vmem:[%s3] sm:$0xff]
  %v95 = vld [vmem:[%s4] sm:$0x1]
  %v97 = vperm.slane %v95, 0
  %vm99 = vcmask 64512
  %v101 = vsel %vm99, %v78, 0
  %v104 = vsel %vm99, %v79, 0
  %v107 = vsel %vm99, %v80, 0
  %v110 = vsel %vm99, %v81, 0
  %v113 = vsel %vm99, %v82, 0
  %v116 = vsel %vm99, %v83, 0
  %v119 = vsel %vm99, %v84, 0
  %v122 = vsel %vm99, %v85, 0
  %v125 = vsel %vm99, %v86, 0
  %v128 = vsel %vm99, %v87, 0
  %v131 = vsel %vm99, %v88, 0
  %v134 = vsel %vm99, %v89, 0
  %v137 = vsel %vm99, %v90, 0
  %v140 = vsel %vm99, %v91, 0
  %v143 = vsel %vm99, %v92, 0
  %v146 = vsel %vm99, %v93, 0
  %148 = vmatpush.msra.mxu0 0.0
  %149 = vmatpush.msra.mxu0 0.0
  %150 = vmatpush.msra.mxu0 0.0
  %151 = vmatpush.msra.mxu0 0.0
  %152 = vmatpush.msra.mxu0 0.0
  %153 = vmatpush.msra.mxu0 0.0
  %154 = vmatpush.msra.mxu0 0.0
  %155 = vmatpush.msra.mxu0 0.0
  %156 = vmatpush.msra.mxu0 0.0
  %157 = vmatpush.msra.mxu0 0.0
  %158 = vmatpush.msra.mxu0 0.0
  %159 = vmatpush.msra.mxu0 0.0
  %160 = vmatpush.msra.mxu0 0.0
  %161 = vmatpush.msra.mxu0 0.0
  %162 = vmatpush.msra.mxu0 0.0
  %163 = vmatpush.msra.mxu0 %v94
  %164 = vmatmul.f32.gmra.mxu0 %v101
  %v165 = vpop.f32.mrf.mxu0
  %v166 = vadd.f32 %v97, %v165
  %167 = vmatmul.f32.gmra.mxu0 %v104
  %v168 = vpop.f32.mrf.mxu0
  %v169 = vadd.f32 %v97, %v168
  %170 = vmatmul.f32.gmra.mxu0 %v107
  %v171 = vpop.f32.mrf.mxu0
  %v172 = vadd.f32 %v97, %v171
  %173 = vmatmul.f32.gmra.mxu0 %v110
  %v174 = vpop.f32.mrf.mxu0
  %v175 = vadd.f32 %v97, %v174
  %176 = vmatmul.f32.gmra.mxu0 %v113
  %v177 = vpop.f32.mrf.mxu0
  %v178 = vadd.f32 %v97, %v177
  %179 = vmatmul.f32.gmra.mxu0 %v116
  %v180 = vpop.f32.mrf.mxu0
  %v181 = vadd.f32 %v97, %v180
  %182 = vmatmul.f32.gmra.mxu0 %v119
  %v183 = vpop.f32.mrf.mxu0
  %v184 = vadd.f32 %v97, %v183
  %185 = vmatmul.f32.gmra.mxu0 %v122
  %v186 = vpop.f32.mrf.mxu0
  %v187 = vadd.f32 %v97, %v186
  %188 = vmatmul.f32.gmra.mxu0 %v125
  %v189 = vpop.f32.mrf.mxu0
  %v190 = vadd.f32 %v97, %v189
  %191 = vmatmul.f32.gmra.mxu0 %v128
  %v192 = vpop.f32.mrf.mxu0
  %v193 = vadd.f32 %v97, %v192
  %194 = vmatmul.f32.gmra.mxu0 %v131
  %v195 = vpop.f32.mrf.mxu0
  %v196 = vadd.f32 %v97, %v195
  %197 = vmatmul.f32.gmra.mxu0 %v134
  %v198 = vpop.f32.mrf.mxu0
  %v199 = vadd.f32 %v97, %v198
  %200 = vmatmul.f32.gmra.mxu0 %v137
  %v201 = vpop.f32.mrf.mxu0
  %v202 = vadd.f32 %v97, %v201
  %203 = vmatmul.f32.gmra.mxu0 %v140
  %v204 = vpop.f32.mrf.mxu0
  %v205 = vadd.f32 %v97, %v204
  %206 = vmatmul.f32.gmra.mxu0 %v143
  %v207 = vpop.f32.mrf.mxu0
  %v208 = vadd.f32 %v97, %v207
  %209 = vmatmul.f32.gmra.mxu0 %v146
  %v210 = vpop.f32.mrf.mxu0
  %v211 = vadd.f32 %v97, %v210
  %212 = vdwg.mxu0
  %vm213 = vcmask 130048
  %214 = vst.msk [vmem:[%s5] sm:$0xff] %vm213, %v166
  %215 = vst.msk [vmem:[%s5 + $0x8] sm:$0xff] %vm213, %v169
  %216 = vst.msk [vmem:[%s5 + $0x10] sm:$0xff] %vm213, %v172
  %217 = vst.msk [vmem:[%s5 + $0x18] sm:$0xff] %vm213, %v175
  %218 = vst.msk [vmem:[%s5 + $0x20] sm:$0xff] %vm213, %v178
  %219 = vst.msk [vmem:[%s5 + $0x28] sm:$0xff] %vm213, %v181
  %220 = vst.msk [vmem:[%s5 + $0x30] sm:$0xff] %vm213, %v184
  %221 = vst.msk [vmem:[%s5 + $0x38] sm:$0xff] %vm213, %v187
  %222 = vst.msk [vmem:[%s5 + $0x40] sm:$0xff] %vm213, %v190
  %223 = vst.msk [vmem:[%s5 + $0x48] sm:$0xff] %vm213, %v193
  %224 = vst.msk [vmem:[%s5 + $0x50] sm:$0xff] %vm213, %v196
  %225 = vst.msk [vmem:[%s5 + $0x58] sm:$0xff] %vm213, %v199
  %226 = vst.msk [vmem:[%s5 + $0x60] sm:$0xff] %vm213, %v202
  %227 = vst.msk [vmem:[%s5 + $0x68] sm:$0xff] %vm213, %v205
  %228 = vst.msk [vmem:[%s5 + $0x70] sm:$0xff] %vm213, %v208
  %229 = vst.msk [vmem:[%s5 + $0x78] sm:$0xff] %vm213, %v211
  %v230 = vsel %vm213, %v166, 0.0
  %v231 = vsel %vm213, %v169, 0.0
  %v232 = vadd.f32 %v230, %v231
  %v233 = vsel %vm213, %v172, 0.0
  %v234 = vadd.f32 %v232, %v233
  %v235 = vsel %vm213, %v175, 0.0
  %v236 = vadd.f32 %v234, %v235
  %v237 = vsel %vm213, %v178, 0.0
  %v238 = vadd.f32 %v236, %v237
  %v239 = vsel %vm213, %v181, 0.0
  %v240 = vadd.f32 %v238, %v239
  %v241 = vsel %vm213, %v184, 0.0
  %v242 = vadd.f32 %v240, %v241
  %v243 = vsel %vm213, %v187, 0.0
  %v244 = vadd.f32 %v242, %v243
  %v245 = vsel %vm213, %v190, 0.0
  %v246 = vadd.f32 %v244, %v245
  %v247 = vsel %vm213, %v193, 0.0
  %v248 = vadd.f32 %v246, %v247
  %v249 = vsel %vm213, %v196, 0.0
  %v250 = vadd.f32 %v248, %v249
  %v251 = vsel %vm213, %v199, 0.0
  %v252 = vadd.f32 %v250, %v251
  %v253 = vsel %vm213, %v202, 0.0
  %v254 = vadd.f32 %v252, %v253
  %v255 = vsel %vm213, %v205, 0.0
  %v256 = vadd.f32 %v254, %v255
  %v257 = vsel %vm213, %v208, 0.0
  %v258 = vadd.f32 %v256, %v257
  %v259 = vsel %vm213, %v211, 0.0
  %v260 = vadd.f32 %v258, %v259
  %v261 = vrot.slane %v260, 4
  %v262 = vadd.f32 %v260, %v261
  %v263 = vrot.slane %v262, 2
  %v264 = vadd.f32 %v262, %v263
  %v265 = vrot.slane %v264, 1
  %v266 = vadd.f32 %v264, %v265
  %v267 = vmul.f32 %v166, %v166
  %v268 = vmul.f32 %v169, %v169
  %v269 = vmul.f32 %v172, %v172
  %v270 = vmul.f32 %v175, %v175
  %v271 = vmul.f32 %v178, %v178
  %v272 = vmul.f32 %v181, %v181
  %v273 = vmul.f32 %v184, %v184
  %v274 = vmul.f32 %v187, %v187
  %v275 = vmul.f32 %v190, %v190
  %v276 = vmul.f32 %v193, %v193
  %v277 = vmul.f32 %v196, %v196
  %v278 = vmul.f32 %v199, %v199
  %v279 = vmul.f32 %v202, %v202
  %v280 = vmul.f32 %v205, %v205
  %v281 = vmul.f32 %v208, %v208
  %v282 = vmul.f32 %v211, %v211
  %v283 = vsel %vm213, %v267, 0.0
  %v284 = vsel %vm213, %v268, 0.0
  %v285 = vadd.f32 %v283, %v284
  %v286 = vsel %vm213, %v269, 0.0
  %v287 = vadd.f32 %v285, %v286
  %v288 = vsel %vm213, %v270, 0.0
  %v289 = vadd.f32 %v287, %v288
  %v290 = vsel %vm213, %v271, 0.0
  %v291 = vadd.f32 %v289, %v290
  %v292 = vsel %vm213, %v272, 0.0
  %v293 = vadd.f32 %v291, %v292
  %v294 = vsel %vm213, %v273, 0.0
  %v295 = vadd.f32 %v293, %v294
  %v296 = vsel %vm213, %v274, 0.0
  %v297 = vadd.f32 %v295, %v296
  %v298 = vsel %vm213, %v275, 0.0
  %v299 = vadd.f32 %v297, %v298
  %v300 = vsel %vm213, %v276, 0.0
  %v301 = vadd.f32 %v299, %v300
  %v302 = vsel %vm213, %v277, 0.0
  %v303 = vadd.f32 %v301, %v302
  %v304 = vsel %vm213, %v278, 0.0
  %v305 = vadd.f32 %v303, %v304
  %v306 = vsel %vm213, %v279, 0.0
  %v307 = vadd.f32 %v305, %v306
  %v308 = vsel %vm213, %v280, 0.0
  %v309 = vadd.f32 %v307, %v308
  %v310 = vsel %vm213, %v281, 0.0
  %v311 = vadd.f32 %v309, %v310
  %v312 = vsel %vm213, %v282, 0.0
  %v313 = vadd.f32 %v311, %v312
  %v314 = vrot.slane %v313, 4
  %v315 = vadd.f32 %v313, %v314
  %v316 = vrot.slane %v315, 2
  %v317 = vadd.f32 %v315, %v316
  %v318 = vrot.slane %v317, 1
  %v319 = vadd.f32 %v317, %v318
  %vm320 = vcmask 1040384
  %v321 = vsel %vm320, %v266, %v319
  %p322 = scmp.eq.s32.totalorder 0, 0
  // Predicated region
  $region22: #{residual_block_forward.6} parent=0 // pred_check
    %p323 = pneg %p322
  $region23: #{residual_block_forward.6} parent=0 // pred_check_branch
    %325 = sbr.rel (%p323) target = $region25
  $region24: #{residual_block_forward.6} parent=0 // pred_region
    %vm326 = vcmask 123904
    %327 = vst.msk [vmem:[%s6] sm:$0x3] %vm326, 0.0
  $region25: #{residual_block_forward.6} parent=0 // pred_fallthru
    _
  %v328 = vld [vmem:[%s6] sm:$0x3]
  %v329 = vadd.f32 %v328, %v321
  %vm330 = vcmask 123904
  %331 = vst.msk [vmem:[%s6] sm:$0x3] %vm330, %v329
  // Predicated region
  $region26: #{residual_block_forward.6} parent=0 // pred_check
    _
  $region27: #{residual_block_forward.6} parent=0 // pred_check_branch
    %333 = sbr.rel (0) target = $region29
  $region28: #{residual_block_forward.6} parent=0 // pred_region
    _
  $region29: #{residual_block_forward.6} parent=0 // pred_fallthru
    _
  // Predicated region
  $region30: #{residual_block_forward.6} parent=0 // pred_check
    _
  $region31: #{residual_block_forward.6} parent=0 // pred_check_branch
    %335 = sbr.rel (0) target = $region33
  $region32: #{residual_block_forward.6} parent=0 // pred_region
    _
  $region33: #{residual_block_forward.6} parent=0 // pred_fallthru
    _
  // Predicated region
  $region34: #{residual_block_forward.6} parent=0 // pred_check
    _
  $region35: #{residual_block_forward.6} parent=0 // pred_check_branch
    %337 = sbr.rel (0) target = $region37
  $region36: #{residual_block_forward.6} parent=0 // pred_region
    _
  $region37: #{residual_block_forward.6} parent=0 // pred_fallthru
    _
  // Predicated region
  $region38: #{residual_block_forward.6} parent=0 // pred_check
    _
  $region39: #{residual_block_forward.6} parent=0 // pred_check_branch
    %339 = sbr.rel (0) target = $region41
  $region40: #{residual_block_forward.6} parent=0 // pred_region
    _
  $region41: #{residual_block_forward.6} parent=0 // pred_fallthru
    _

// kernel: residual_block_forward.7
$region0: #{residual_block_forward.7}
  #allocation0 [shape = 'u32[]', space=smem, size = 0x4, offset = 0x4, fixed_abs, tag = 'smem constant byte address 0x4 - core index']
  #allocation1 [shape = 'u32[72,128]{1,0:T(1,128)}', space=vmem, size = 0x9000, scoped, tag = 'internal scratch']
  %s0 = inlined_call_operand.vmem [shape: f32[16,128], index: 0, kind: input, shape index: {}]
  %s1 = inlined_call_operand.vmem [shape: f32[16,128], index: 1, kind: input, shape index: {}]
  %s2 = inlined_call_operand.vmem [shape: f32[1,128], index: 2, kind: input, shape index: {}]
  %s3 = inlined_call_operand.vmem [shape: f32[1,128], index: 3, kind: input, shape index: {}]
  %s4 = inlined_call_operand.vmem [shape: f32[16,128], index: 4, kind: output, shape index: {}]
  %s5 = sld [smem:[#allocation0]]
  $region26: #{residual_block_forward.7} parent=0
    _
  %s7 = ssub.s32 1, %s5
  %s8 = scalar_select 0, %s7, %s5
  // Predicated region
  $region2: #{residual_block_forward.7} parent=0 // pred_check
    _
  $region3: #{residual_block_forward.7} parent=0 // pred_check_branch
    %10 = sbr.rel (0) target = $region5
  $region4: #{residual_block_forward.7} parent=0 // pred_region
    _
  $region5: #{residual_block_forward.7} parent=0 // pred_fallthru
    _
  // Predicated region
  $region6: #{residual_block_forward.7} parent=0 // pred_check
    _
  $region7: #{residual_block_forward.7} parent=0 // pred_check_branch
    %12 = sbr.rel (0) target = $region9
  $region8: #{residual_block_forward.7} parent=0 // pred_region
    _
  $region9: #{residual_block_forward.7} parent=0 // pred_fallthru
    _
  // Predicated region
  $region10: #{residual_block_forward.7} parent=0 // pred_check
    _
  $region11: #{residual_block_forward.7} parent=0 // pred_check_branch
    %14 = sbr.rel (0) target = $region13
  $region12: #{residual_block_forward.7} parent=0 // pred_region
    _
  $region13: #{residual_block_forward.7} parent=0 // pred_fallthru
    _
  // Predicated region
  $region14: #{residual_block_forward.7} parent=0 // pred_check
    _
  $region15: #{residual_block_forward.7} parent=0 // pred_check_branch
    %16 = sbr.rel (0) target = $region17
  $region16: #{residual_block_forward.7} parent=0 // pred_region
    _
  $region17: #{residual_block_forward.7} parent=0 // pred_fallthru
    _
  %v17 = vld [vmem:[%s0] sm:$0xff]
  %v18 = vld [vmem:[%s0 + $0x8] sm:$0xff]
  %v19 = vld [vmem:[%s1] sm:$0xff]
  %v20 = vld [vmem:[%s1 + $0x8] sm:$0xff]
  %v21 = vld [vmem:[%s2] sm:$0x1]
  %v23 = vperm.slane %v21, 0
  %v25 = vmul.f32 %v19, %v23
  %v26 = vmul.f32 %v20, %v23
  %v27 = vadd.f32 %v17, %v25
  %v28 = vadd.f32 %v18, %v26
  %v29 = vld [vmem:[%s3] sm:$0x1]
  %v31 = vperm.slane %v29, 0
  %v33 = vadd.f32 %v27, %v31
  %v34 = vadd.f32 %v28, %v31
  %v35 = vmax.f32 %v33, 0.0
  %v36 = vmax.f32 %v34, 0.0
  %37 = vst [vmem:[%s4] sm:$0xff] %v35
  %38 = vst [vmem:[%s4 + $0x8] sm:$0xff] %v36
  // Predicated region
  $region18: #{residual_block_forward.7} parent=0 // pred_check
    _
  $region19: #{residual_block_forward.7} parent=0 // pred_check_branch
    %40 = sbr.rel (0) target = $region21
  $region20: #{residual_block_forward.7} parent=0 // pred_region
    _
  $region21: #{residual_block_forward.7} parent=0 // pred_fallthru
    _
  // Predicated region
  $region22: #{residual_block_forward.7} parent=0 // pred_check
    _
  $region23: #{residual_block_forward.7} parent=0 // pred_check_branch
    %42 = sbr.rel (0) target = $region25
  $region24: #{residual_block_forward.7} parent=0 // pred_region
    _
  $region25: #{residual_block_forward.7} parent=0 // pred_fallthru
    _

// kernel: residual_block_forward.5
$region0: #{residual_block_forward.5}
  #allocation0 [shape = 'u32[]', space=smem, size = 0x4, offset = 0x4, fixed_abs, tag = 'smem constant byte address 0x4 - core index']
  #allocation1 [shape = 'u32[72,128]{1,0:T(1,128)}', space=vmem, size = 0x9000, scoped, tag = 'internal scratch']
  #allocation2 [shape = 'f32[10,10,8]{2,1,0:T(8,128)}', space=vmem, size = 0x14000, scoped, tag = 'scratch operand']
  %s0 = inlined_call_operand.vmem [shape: f32[2,8,8,8], index: 0, kind: input, shape index: {}]
  %s1 = inlined_call_operand.vmem [shape: f32[1,8], index: 1, kind: input, shape index: {}]
  %s2 = inlined_call_operand.vmem [shape: f32[1,8], index: 2, kind: input, shape index: {}]
  %s3 = inlined_call_operand.vmem [shape: f32[2,36,4], index: 3, kind: input, shape index: {}]
  %s4 = inlined_call_operand.vmem [shape: f32[1,8], index: 4, kind: input, shape index: {}]
  %s5 = inlined_call_operand.vmem [shape: f32[2,8,8,8], index: 5, kind: output, shape index: {0}]
  %s6 = inlined_call_operand.vmem [shape: f32[2,8], index: 6, kind: output, shape index: {1}]
  %7 = xla_tuple %s5, %s6
  %s8 = sld [smem:[#allocation0]]
  $region65: #{residual_block_forward.5} parent=0
    _
  %s10 = ssub.s32 1, %s8
  %s11 = scalar_select 0, %s10, %s8
  loop: start=0, step=1, limit=4
  $region2: #{residual_block_forward.5} parent=0 // loop_pre_header
    _
  $region3: #{residual_block_forward.5} parent=0 // loop_header
    %s13 = sphi 0, %s17
    %p14 = scmp.ge.s32.totalorder %s13, 4
    %s23 = sphi 0, %s25
    %s26 = sphi 0, %s23
    %s27 = sphi 0, %s26
    %s43 = sphi 0, %s27
    %s47 = sphi 0, %s47
    %s49 = sphi 0, %s47
    %s50 = sphi 0, %s49
    %s64 = sphi 0, %s50
    %s68 = sphi 0, %s68
    %s70 = sphi 0, %s68
    %s71 = sphi 0, %s70
    %s85 = sphi 0, %s71
    %s89 = sphi 0, %s89
    %s91 = sphi 0, %s89
    %s92 = sphi 0, %s91
    %s106 = sphi 0, %s92
    %s110 = sphi 0, %s110
    %s112 = sphi 0, %s110
    %s113 = sphi 0, %s112
    %s127 = sphi 0, %s113
    %s133 = sphi 0, %s135
    %s136 = sphi 0, %s133
    %s137 = sphi 0, %s136
    %s153 = sphi 0, %s137
    %s157 = sphi 0, %s157
    %s159 = sphi 0, %s157
    %s160 = sphi 0, %s159
    %s174 = sphi 0, %s160
  $region4: #{residual_block_forward.5} parent=0 // loop_header_branch
    %16 = sbr.rel (%p14) target = $region8
  $region5: #{residual_block_forward.5} parent=0 // loop_body
    %s18 = ssub.s32 %s13, 1
    %s19 = ssub.s32 %s13, 2
    %s20 = sadd.s32 %s13, 1
    %s21 = ssub.s32 %s13, %s20
    %p22 = scmp.eq.s32.totalorder %s21, 0
    %s24 = sadd.s32 %s23, 1
    %s25 = scalar_select %p22, %s23, %s24
    %p28 = pneg %p22
    %p29 = scmp.eq.s32.totalorder %s13, 1
    %p30 = por %p28, %p29
    %p31 = scmp.ne.s32.totalorder %s23, %s26
    %p32 = scmp.eq.s32.totalorder %s13, 0
    %p33 = por %p31, %p32
    %p34 = scmp.ne.s32.totalorder %s23, %s26
    %p35 = scmp.eq.s32.totalorder %s18, 1
    %p36 = por %p34, %p35
    %p37 = scmp.ne.s32.totalorder %s26, %s27
    %p38 = scmp.eq.s32.totalorder %s18, 0
    %p39 = por %p37, %p38
    %p40 = scmp.ne.s32.totalorder %s26, %s27
    %p41 = scmp.eq.s32.totalorder %s19, 1
    %p42 = por %p40, %p41
    %p44 = scmp.ne.s32.totalorder %s27, %s43
    %p45 = scmp.eq.s32.totalorder %s19, 0
    %p46 = por %p44, %p45
    %s48 = sadd.s32 %s47, 1
    %p51 = scmp.eq.s32.totalorder %s13, 1
    %p52 = scmp.ne.s32.totalorder %s47, %s49
    %p53 = scmp.eq.s32.totalorder %s13, 0
    %p54 = por %p52, %p53
    %p55 = scmp.ne.s32.totalorder %s47, %s49
    %p56 = scmp.eq.s32.totalorder %s18, 1
    %p57 = por %p55, %p56
    %p58 = scmp.ne.s32.totalorder %s49, %s50
    %p59 = scmp.eq.s32.totalorder %s18, 0
    %p60 = por %p58, %p59
    %p61 = scmp.ne.s32.totalorder %s49, %s50
    %p62 = scmp.eq.s32.totalorder %s19, 1
    %p63 = por %p61, %p62
    %p65 = scmp.ne.s32.totalorder %s50, %s64
    %p66 = scmp.eq.s32.totalorder %s19, 0
    %p67 = por %p65, %p66
    %s69 = sadd.s32 %s68, 1
    %p72 = scmp.eq.s32.totalorder %s13, 1
    %p73 = scmp.ne.s32.totalorder %s68, %s70
    %p74 = scmp.eq.s32.totalorder %s13, 0
    %p75 = por %p73, %p74
    %p76 = scmp.ne.s32.totalorder %s68, %s70
    %p77 = scmp.eq.s32.totalorder %s18, 1
    %p78 = por %p76, %p77
    %p79 = scmp.ne.s32.totalorder %s70, %s71
    %p80 = scmp.eq.s32.totalorder %s18, 0
    %p81 = por %p79, %p80
    %p82 = scmp.ne.s32.totalorder %s70, %s71
    %p83 = scmp.eq.s32.totalorder %s19, 1
    %p84 = por %p82, %p83
    %p86 = scmp.ne.s32.totalorder %s71, %s85
    %p87 = scmp.eq.s32.totalorder %s19, 0
    %p88 = por %p86, %p87
    %s90 = sadd.s32 %s89, 1
    %p93 = scmp.eq.s32.totalorder %s13, 1
    %p94 = scmp.ne.s32.totalorder %s89, %s91
    %p95 = scmp.eq.s32.totalorder %s13, 0
    %p96 = por %p94, %p95
    %p97 = scmp.ne.s32.totalorder %s89, %s91
    %p98 = scmp.eq.s32.totalorder %s18, 1
    %p99 = por %p97, %p98
    %p100 = scmp.ne.s32.totalorder %s91, %s92
    %p101 = scmp.eq.s32.totalorder %s18, 0
    %p102 = por %p100, %p101
    %p103 = scmp.ne.s32.totalorder %s91, %s92
    %p104 = scmp.eq.s32.totalorder %s19, 1
    %p105 = por %p103, %p104
    %p107 = scmp.ne.s32.totalorder %s92, %s106
    %p108 = scmp.eq.s32.totalorder %s19, 0
    %p109 = por %p107, %p108
    %s111 = sadd.s32 %s110, 1
    %p114 = scmp.eq.s32.totalorder %s13, 1
    %p115 = scmp.ne.s32.totalorder %s110, %s112
    %p116 = scmp.eq.s32.totalorder %s13, 0
    %p117 = por %p115, %p116
    %p118 = scmp.ne.s32.totalorder %s110, %s112
    %p119 = scmp.eq.s32.totalorder %s18, 1
    %p120 = por %p118, %p119
    %p121 = scmp.ne.s32.totalorder %s112, %s113
    %p122 = scmp.eq.s32.totalorder %s18, 0
    %p123 = por %p121, %p122
    %p124 = scmp.ne.s32.totalorder %s112, %s113
    %p125 = scmp.eq.s32.totalorder %s19, 1
    %p126 = por %p124, %p125
    %p128 = scmp.ne.s32.totalorder %s113, %s127
    %p129 = scmp.eq.s32.totalorder %s19, 0
    %p130 = por %p128, %p129
    %s131 = ssub.s32 %s13, %s20
    %p132 = scmp.eq.s32.totalorder %s131, 0
    %s134 = sadd.s32 %s133, 1
    %s135 = scalar_select %p132, %s133, %s134
    %p138 = pneg %p132
    %p139 = scmp.eq.s32.totalorder %s13, 1
    %p140 = por %p138, %p139
    %p141 = scmp.ne.s32.totalorder %s133, %s136
    %p142 = scmp.eq.s32.totalorder %s13, 0
    %p143 = por %p141, %p142
    %p144 = scmp.ne.s32.totalorder %s133, %s136
    %p145 = scmp.eq.s32.totalorder %s18, 1
    %p146 = por %p144, %p145
    %p147 = scmp.ne.s32.totalorder %s136, %s137
    %p148 = scmp.eq.s32.totalorder %s18, 0
    %p149 = por %p147, %p148
    %p150 = scmp.ne.s32.totalorder %s136, %s137
    %p151 = scmp.eq.s32.totalorder %s19, 1
    %p152 = por %p150, %p151
    %p154 = scmp.ne.s32.totalorder %s137, %s153
    %p155 = scmp.eq.s32.totalorder %s19, 0
    %p156 = por %p154, %p155
    %s158 = sadd.s32 %s157, 1
    %p161 = scmp.eq.s32.totalorder %s13, 1
    %p162 = scmp.ne.s32.totalorder %s157, %s159
    %p163 = scmp.eq.s32.totalorder %s13, 0
    %p164 = por %p162, %p163
    %p165 = scmp.ne.s32.totalorder %s157, %s159
    %p166 = scmp.eq.s32.totalorder %s18, 1
    %p167 = por %p165, %p166
    %p168 = scmp.ne.s32.totalorder %s159, %s160
    %p169 = scmp.eq.s32.totalorder %s18, 0
    %p170 = por %p168, %p169
    %p171 = scmp.ne.s32.totalorder %s159, %s160
    %p172 = scmp.eq.s32.totalorder %s19, 1
    %p173 = por %p171, %p172
    %p175 = scmp.ne.s32.totalorder %s160, %s174
    %p176 = scmp.eq.s32.totalorder %s19, 0
    %p177 = por %p175, %p176
    %p178 = scmp.le.s32.totalorder 1, %s13
    %p179 = scmp.lt.s32.totalorder %s13, 3
    %p180 = pnand %p178, %p179
    %p181 = pneg %p180
    // Predicated region
    $region9: #{residual_block_forward.5} parent=5 // pred_check
      _
    $region10: #{residual_block_forward.5} parent=5 // pred_check_branch
      %183 = sbr.rel (%p180) target = $region12
    $region11: #{residual_block_forward.5} parent=5 // pred_region
      %s184 = ssub.s32 %s13, 1
      // Predicated region
      $region13: #{residual_block_forward.5} parent=11 // pred_check
        %p185 = pneg %p60
      $region14: #{residual_block_forward.5} parent=11 // pred_check_branch
        %187 = sbr.rel (%p185) target = $region16
      $region15: #{residual_block_forward.5} parent=11 // pred_region
        _
      $region16: #{residual_block_forward.5} parent=11 // pred_fallthru
        _
      // Predicated region
      $region17: #{residual_block_forward.5} parent=11 // pred_check
        %p188 = pneg %p81
      $region18: #{residual_block_forward.5} parent=11 // pred_check_branch
        %190 = sbr.rel (%p188) target = $region20
      $region19: #{residual_block_forward.5} parent=11 // pred_region
        _
      $region20: #{residual_block_forward.5} parent=11 // pred_fallthru
        _
      // Predicated region
      $region21: #{residual_block_forward.5} parent=11 // pred_check
        %p191 = pneg %p102
      $region22: #{residual_block_forward.5} parent=11 // pred_check_branch
        %193 = sbr.rel (%p191) target = $region24
      $region23: #{residual_block_forward.5} parent=11 // pred_region
        _
      $region24: #{residual_block_forward.5} parent=11 // pred_fallthru
        _
      // Predicated region
      $region25: #{residual_block_forward.5} parent=11 // pred_check
        %p194 = pneg %p123
      $region26: #{residual_block_forward.5} parent=11 // pred_check_branch
        %196 = sbr.rel (%p194) target = $region28
      $region27: #{residual_block_forward.5} parent=11 // pred_region
        _
      $region28: #{residual_block_forward.5} parent=11 // pred_fallthru
        _
    $region12: #{residual_block_forward.5} parent=5 // pred_fallthru
      _
    %p197 = scmp.lt.s32.totalorder %s13, 2
    // Predicated region
    $region29: #{residual_block_forward.5} parent=5 // pred_check
      %p198 = pneg %p197
    $region30: #{residual_block_forward.5} parent=5 // pred_check_branch
      %200 = sbr.rel (%p198) target = $region32
    $region31: #{residual_block_forward.5} parent=5 // pred_region
      // Predicated region
      $region33: #{residual_block_forward.5} parent=31 // pred_check
        %p201 = pneg %p33
      $region34: #{residual_block_forward.5} parent=31 // pred_check_branch
        %203 = sbr.rel (%p201) target = $region36
      $region35: #{residual_block_forward.5} parent=31 // pred_region
        %p204 = scmp.lt.s32.totalorder %s13, 1
        %s205 = scalar_select %p204, %s13, 1
        %s206 = smul.addr %s205, 8
        %s207 = smul.addr %s206, 8
        %s208 = scalar_lea.vmem %s0, %s207
      $region36: #{residual_block_forward.5} parent=31 // pred_fallthru
        _
    $region32: #{residual_block_forward.5} parent=5 // pred_fallthru
      _
    %p209 = scmp.le.s32.totalorder 1, %s13
    %p210 = scmp.lt.s32.totalorder %s13, 3
    %p211 = pnand %p209, %p210
    %p212 = pneg %p211
    // Predicated region
    $region37: #{residual_block_forward.5} parent=5 // pred_check
      _
    $region38: #{residual_block_forward.5} parent=5 // pred_check_branch
      %214 = sbr.rel (%p211) target = $region40
    $region39: #{residual_block_forward.5} parent=5 // pred_region
      %s215 = ssub.s32 %s13, 1
      %p216 = scmp.lt.s32.totalorder %s18, 1
      %s217 = scalar_select %p216, %s18, 1
      %s218 = smul.addr %s217, 8
      %s219 = smul.addr %s218, 8
      %s220 = scalar_lea.vmem %s0, %s219
      %p221 = pneg %p39
      %p222 = pneg %p36
      %p223 = pneg %p60
      %p224 = pneg %p57
      %p225 = pneg %p81
      %p226 = pneg %p78
      %p227 = pneg %p102
      %p228 = pneg %p99
      %p229 = pneg %p123
      %p230 = pneg %p120
      %p231 = pneg %p149
      %p232 = pneg %p146
      %p233 = scmp.lt.s32.totalorder %s18, 1
      %s234 = scalar_select %p233, %s18, 1
      %s235 = smul.addr %s234, 8
      %s236 = smul.addr %s235, 8
      %s237 = scalar_lea.vmem %s5, %s236
      %p238 = pneg %p170
      %p239 = pneg %p167
      %p240 = scmp.lt.s32.totalorder %s18, 1
      %s241 = scalar_select %p240, %s18, 1
      %s242 = smul.addr %s241, 8
      %s243 = smul.addr %s242, 8
      %s244 = scalar_lea.vmem %s0, %s243
      %p245 = scmp.lt.s32.totalorder %s18, 1
      %s246 = scalar_select %p245, %s18, 1
      %s247 = smul.addr %s246, 8
      %s248 = smul.addr %s247, 8
      %s249 = scalar_lea.vmem %s5, %s248
      %v250 = vld [vmem:[%s244] sm:$0xff]
      %v251 = vld [vmem:[%s244 + $0x8] sm:$0xff]
      %v252 = vld [vmem:[%s244 + $0x10] sm:$0xff]
      %v253 = vld [vmem:[%s244 + $0x18] sm:$0xff]
      %v254 = vld [vmem:[%s244 + $0x20] sm:$0xff]
      %v255 = vld [vmem:[%s244 + $0x28] sm:$0xff]
      %v256 = vld [vmem:[%s244 + $0x30] sm:$0xff]
      %v257 = vld [vmem:[%s244 + $0x38] sm:$0xff]
      %v258 = vld [vmem:[%s1] sm:$0x1]
      %v260 = vperm.slane %v258, 0
      %v262 = vmul.f32 %v250, %v260
      %v263 = vmul.f32 %v251, %v260
      %v264 = vmul.f32 %v252, %v260
      %v265 = vmul.f32 %v253, %v260
      %v266 = vmul.f32 %v254, %v260
      %v267 = vmul.f32 %v255, %v260
      %v268 = vmul.f32 %v256, %v260
      %v269 = vmul.f32 %v257, %v260
      %v270 = vld [vmem:[%s2] sm:$0x1]
      %v272 = vperm.slane %v270, 0
      %v274 = vadd.f32 %v262, %v272
      %v275 = vadd.f32 %v263, %v272
      %v276 = vadd.f32 %v264, %v272
      %v277 = vadd.f32 %v265, %v272
      %v278 = vadd.f32 %v266, %v272
      %v279 = vadd.f32 %v267, %v272
      %v280 = vadd.f32 %v268, %v272
      %v281 = vadd.f32 %v269, %v272
      %v282 = vmax.f32 %v274, 0.0
      %v283 = vmax.f32 %v275, 0.0
      %v284 = vmax.f32 %v276, 0.0
      %v285 = vmax.f32 %v277, 0.0
      %v286 = vmax.f32 %v278, 0.0
      %v287 = vmax.f32 %v279, 0.0
      %v288 = vmax.f32 %v280, 0.0
      %v289 = vmax.f32 %v281, 0.0
      %vm290 = vcmask 64512
      %291 = vst.msk [vmem:[#allocation2] sm:$0xff] %vm290, 0.0
      %vm292 = vcmask 58368
      %293 = vst.msk [vmem:[#allocation2 + $0x8] sm:$0x3] %vm292, 0.0
      %294 = vst.msk [vmem:[#allocation2 + $0x10] sm:$0xff] %vm290, 0.0
      %295 = vst.msk [vmem:[#allocation2 + $0x18] sm:$0x3] %vm292, 0.0
      %296 = vst.msk [vmem:[#allocation2 + $0x20] sm:$0xff] %vm290, 0.0
      %297 = vst.msk [vmem:[#allocation2 + $0x28] sm:$0x3] %vm292, 0.0
      %298 = vst.msk [vmem:[#allocation2 + $0x30] sm:$0xff] %vm290, 0.0
      %299 = vst.msk [vmem:[#allocation2 + $0x38] sm:$0x3] %vm292, 0.0
      %300 = vst.msk [vmem:[#allocation2 + $0x40] sm:$0xff] %vm290, 0.0
      %301 = vst.msk [vmem:[#allocation2 + $0x48] sm:$0x3] %vm292, 0.0
      %302 = vst.msk [vmem:[#allocation2 + $0x50] sm:$0xff] %vm290, 0.0
      %303 = vst.msk [vmem:[#allocation2 + $0x58] sm:$0x3] %vm292, 0.0
      %304 = vst.msk [vmem:[#allocation2 + $0x60] sm:$0xff] %vm290, 0.0
      %305 = vst.msk [vmem:[#allocation2 + $0x68] sm:$0x3] %vm292, 0.0
      %306 = vst.msk [vmem:[#allocation2 + $0x70] sm:$0xff] %vm290, 0.0
      %307 = vst.msk [vmem:[#allocation2 + $0x78] sm:$0x3] %vm292, 0.0
      %308 = vst.msk [vmem:[#allocation2 + $0x80] sm:$0xff] %vm290, 0.0
      %309 = vst.msk [vmem:[#allocation2 + $0x88] sm:$0x3] %vm292, 0.0
      %310 = vst.msk [vmem:[#allocation2 + $0x90] sm:$0xff] %vm290, 0.0
      %311 = vst.msk [vmem:[#allocation2 + $0x98] sm:$0x3] %vm292, 0.0
      %s312 = scalar_lea.vmem [#allocation2], 16
      %313 = vst.msk [vmem:[%s312 + $0x1] sm:$0xff] %vm290, %v282
      %314 = vst.msk [vmem:[%s312 + $0x11] sm:$0xff] %vm290, %v283
      %315 = vst.msk [vmem:[%s312 + $0x21] sm:$0xff] %vm290, %v284
      %316 = vst.msk [vmem:[%s312 + $0x31] sm:$0xff] %vm290, %v285
      %317 = vst.msk [vmem:[%s312 + $0x41] sm:$0xff] %vm290, %v286
      %318 = vst.msk [vmem:[%s312 + $0x51] sm:$0xff] %vm290, %v287
      %319 = vst.msk [vmem:[%s312 + $0x61] sm:$0xff] %vm290, %v288
      %320 = vst.msk [vmem:[%s312 + $0x71] sm:$0xff] %vm290, %v289
      %v321 = vld [vmem:[#allocation2] sm:$0xff]
      %v322 = vld [vmem:[#allocation2 + $0x10] sm:$0xff]
      %v323 = vld [vmem:[#allocation2 + $0x20] sm:$0xff]
      %v324 = vld [vmem:[#allocation2 + $0x30] sm:$0xff]
      %v325 = vld [vmem:[#allocation2 + $0x40] sm:$0xff]
      %v326 = vld [vmem:[#allocation2 + $0x50] sm:$0xff]
      %v327 = vld [vmem:[#allocation2 + $0x60] sm:$0xff]
      %v328 = vld [vmem:[#allocation2 + $0x70] sm:$0xff]
      %v329 = vld [vmem:[#allocation2 + $0x1] sm:$0xff]
      %v330 = vld [vmem:[#allocation2 + $0x11] sm:$0xff]
      %v331 = vld [vmem:[#allocation2 + $0x21] sm:$0xff]
      %v332 = vld [vmem:[#allocation2 + $0x31] sm:$0xff]
      %v333 = vld [vmem:[#allocation2 + $0x41] sm:$0xff]
      %v334 = vld [vmem:[#allocation2 + $0x51] sm:$0xff]
      %v335 = vld [vmem:[#allocation2 + $0x61] sm:$0xff]
      %v336 = vld [vmem:[#allocation2 + $0x71] sm:$0xff]
      %v337 = vld [vmem:[#allocation2 + $0x2] sm:$0xff]
      %v338 = vld [vmem:[#allocation2 + $0x12] sm:$0xff]
      %v339 = vld [vmem:[#allocation2 + $0x22] sm:$0xff]
      %v340 = vld [vmem:[#allocation2 + $0x32] sm:$0xff]
      %v341 = vld [vmem:[#allocation2 + $0x42] sm:$0xff]
      %v342 = vld [vmem:[#allocation2 + $0x52] sm:$0xff]
      %v343 = vld [vmem:[#allocation2 + $0x62] sm:$0xff]
      %v344 = vld [vmem:[#allocation2 + $0x72] sm:$0xff]
      %v345 = vld [vmem:[%s312] sm:$0xff]
      %v346 = vld [vmem:[%s312 + $0x10] sm:$0xff]
      %v347 = vld [vmem:[%s312 + $0x20] sm:$0xff]
      %v348 = vld [vmem:[%s312 + $0x30] sm:$0xff]
      %v349 = vld [vmem:[%s312 + $0x40] sm:$0xff]
      %v350 = vld [vmem:[%s312 + $0x50] sm:$0xff]
      %v351 = vld [vmem:[%s312 + $0x60] sm:$0xff]
      %v352 = vld [vmem:[%s312 + $0x70] sm:$0xff]
      %v353 = vld [vmem:[%s312 + $0x1] sm:$0xff]
      %v354 = vld [vmem:[%s312 + $0x11] sm:$0xff]
      %v355 = vld [vmem:[%s312 + $0x21] sm:$0xff]
      %v356 = vld [vmem:[%s312 + $0x31] sm:$0xff]
      %v357 = vld [vmem:[%s312 + $0x41] sm:$0xff]
      %v358 = vld [vmem:[%s312 + $0x51] sm:$0xff]
      %v359 = vld [vmem:[%s312 + $0x61] sm:$0xff]
      %v360 = vld [vmem:[%s312 + $0x71] sm:$0xff]
      %v361 = vld [vmem:[%s312 + $0x2] sm:$0xff]
      %v362 = vld [vmem:[%s312 + $0x12] sm:$0xff]
      %v363 = vld [vmem:[%s312 + $0x22] sm:$0xff]
      %v364 = vld [vmem:[%s312 + $0x32] sm:$0xff]
      %v365 = vld [vmem:[%s312 + $0x42] sm:$0xff]
      %v366 = vld [vmem:[%s312 + $0x52] sm:$0xff]
      %v367 = vld [vmem:[%s312 + $0x62] sm:$0xff]
      %v368 = vld [vmem:[%s312 + $0x72] sm:$0xff]
      %s369 = scalar_lea.vmem [#allocation2], 32
      %v370 = vld [vmem:[%s369] sm:$0xff]
      %v371 = vld [vmem:[%s369 + $0x10] sm:$0xff]
      %v372 = vld [vmem:[%s369 + $0x20] sm:$0xff]
      %v373 = vld [vmem:[%s369 + $0x30] sm:$0xff]
      %v374 = vld [vmem:[%s369 + $0x40] sm:$0xff]
      %v375 = vld [vmem:[%s369 + $0x50] sm:$0xff]
      %v376 = vld [vmem:[%s369 + $0x60] sm:$0xff]
      %v377 = vld [vmem:[%s369 + $0x70] sm:$0xff]
      %v378 = vld [vmem:[%s369 + $0x1] sm:$0xff]
      %v379 = vld [vmem:[%s369 + $0x11] sm:$0xff]
      %v380 = vld [vmem:[%s369 + $0x21] sm:$0xff]
      %v381 = vld [vmem:[%s369 + $0x31] sm:$0xff]
      %v382 = vld [vmem:[%s369 + $0x41] sm:$0xff]
      %v383 = vld [vmem:[%s369 + $0x51] sm:$0xff]
      %v384 = vld [vmem:[%s369 + $0x61] sm:$0xff]
      %v385 = vld [vmem:[%s369 + $0x71] sm:$0xff]
      %v386 = vld [vmem:[%s369 + $0x2] sm:$0xff]
      %v387 = vld [vmem:[%s369 + $0x12] sm:$0xff]
      %v388 = vld [vmem:[%s369 + $0x22] sm:$0xff]
      %v389 = vld [vmem:[%s369 + $0x32] sm:$0xff]
      %v390 = vld [vmem:[%s369 + $0x42] sm:$0xff]
      %v391 = vld [vmem:[%s369 + $0x52] sm:$0xff]
      %v392 = vld [vmem:[%s369 + $0x62] sm:$0xff]
      %v393 = vld [vmem:[%s369 + $0x72] sm:$0xff]
      %402 = vrot.lane.b32.xlu0 %v329, 4
      %v403 = vpop.permute.xlu0 %402
      %404 = vrot.lane.b32.xlu0 %v330, 4
      %v405 = vpop.permute.xlu0 %404
      %406 = vrot.lane.b32.xlu0 %v331, 4
      %v407 = vpop.permute.xlu0 %406
      %408 = vrot.lane.b32.xlu0 %v332, 4
      %v409 = vpop.permute.xlu0 %408
      %410 = vrot.lane.b32.xlu0 %v333, 4
      %v411 = vpop.permute.xlu0 %410
      %412 = vrot.lane.b32.xlu0 %v334, 4
      %v413 = vpop.permute.xlu0 %412
      %414 = vrot.lane.b32.xlu0 %v335, 4
      %v415 = vpop.permute.xlu0 %414
      %416 = vrot.lane.b32.xlu0 %v336, 4
      %v417 = vpop.permute.xlu0 %416
      %434 = vrot.lane.b32.xlu0 %v337, 8
      %v435 = vpop.permute.xlu0 %434
      %436 = vrot.lane.b32.xlu0 %v338, 8
      %v437 = vpop.permute.xlu0 %436
      %438 = vrot.lane.b32.xlu0 %v339, 8
      %v439 = vpop.permute.xlu0 %438
      %440 = vrot.lane.b32.xlu0 %v340, 8
      %v441 = vpop.permute.xlu0 %440
      %442 = vrot.lane.b32.xlu0 %v341, 8
      %v443 = vpop.permute.xlu0 %442
      %444 = vrot.lane.b32.xlu0 %v342, 8
      %v445 = vpop.permute.xlu0 %444
      %446 = vrot.lane.b32.xlu0 %v343, 8
      %v447 = vpop.permute.xlu0 %446
      %448 = vrot.lane.b32.xlu0 %v344, 8
      %v449 = vpop.permute.xlu0 %448
      %466 = vrot.lane.b32.xlu0 %v345, 12
      %v467 = vpop.permute.xlu0 %466
      %468 = vrot.lane.b32.xlu0 %v346, 12
      %v469 = vpop.permute.xlu0 %468
      %470 = vrot.lane.b32.xlu0 %v347, 12
      %v471 = vpop.permute.xlu0 %470
      %472 = vrot.lane.b32.xlu0 %v348, 12
      %v473 = vpop.permute.xlu0 %472
      %474 = vrot.lane.b32.xlu0 %v349, 12
      %v475 = vpop.permute.xlu0 %474
      %476 = vrot.lane.b32.xlu0 %v350, 12
      %v477 = vpop.permute.xlu0 %476
      %478 = vrot.lane.b32.xlu0 %v351, 12
      %v479 = vpop.permute.xlu0 %478
      %480 = vrot.lane.b32.xlu0 %v352, 12
      %v481 = vpop.permute.xlu0 %480
      %498 = vrot.lane.b32.xlu0 %v353, 16
      %v499 = vpop.permute.xlu0 %498
      %500 = vrot.lane.b32.xlu0 %v354, 16
      %v501 = vpop.permute.xlu0 %500
      %502 = vrot.lane.b32.xlu0 %v355, 16
      %v503 = vpop.permute.xlu0 %502
      %504 = vrot.lane.b32.xlu0 %v356, 16
      %v505 = vpop.permute.xlu0 %504
      %506 = vrot.lane.b32.xlu0 %v357, 16
      %v507 = vpop.permute.xlu0 %506
      %508 = vrot.lane.b32.xlu0 %v358, 16
      %v509 = vpop.permute.xlu0 %508
      %510 = vrot.lane.b32.xlu0 %v359, 16
      %v511 = vpop.permute.xlu0 %510
      %512 = vrot.lane.b32.xlu0 %v360, 16
      %v513 = vpop.permute.xlu0 %512
      %530 = vrot.lane.b32.xlu0 %v361, 20
      %v531 = vpop.permute.xlu0 %530
      %532 = vrot.lane.b32.xlu0 %v362, 20
      %v533 = vpop.permute.xlu0 %532
      %534 = vrot.lane.b32.xlu0 %v363, 20
      %v535 = vpop.permute.xlu0 %534
      %536 = vrot.lane.b32.xlu0 %v364, 20
      %v537 = vpop.permute.xlu0 %536
      %538 = vrot.lane.b32.xlu0 %v365, 20
      %v539 = vpop.permute.xlu0 %538
      %540 = vrot.lane.b32.xlu0 %v366, 20
      %v541 = vpop.permute.xlu0 %540
      %542 = vrot.lane.b32.xlu0 %v367, 20
      %v543 = vpop.permute.xlu0 %542
      %544 = vrot.lane.b32.xlu0 %v368, 20
      %v545 = vpop.permute.xlu0 %544
      %562 = vrot.lane.b32.xlu0 %v370, 24
      %v563 = vpop.permute.xlu0 %562
      %564 = vrot.lane.b32.xlu0 %v371, 24
      %v565 = vpop.permute.xlu0 %564
      %566 = vrot.lane.b32.xlu0 %v372, 24
      %v567 = vpop.permute.xlu0 %566
      %568 = vrot.lane.b32.xlu0 %v373, 24
      %v569 = vpop.permute.xlu0 %568
      %570 = vrot.lane.b32.xlu0 %v374, 24
      %v571 = vpop.permute.xlu0 %570
      %572 = vrot.lane.b32.xlu0 %v375, 24
      %v573 = vpop.permute.xlu0 %572
      %574 = vrot.lane.b32.xlu0 %v376, 24
      %v575 = vpop.permute.xlu0 %574
      %576 = vrot.lane.b32.xlu0 %v377, 24
      %v577 = vpop.permute.xlu0 %576
      %594 = vrot.lane.b32.xlu0 %v378, 28
      %v595 = vpop.permute.xlu0 %594
      %596 = vrot.lane.b32.xlu0 %v379, 28
      %v597 = vpop.permute.xlu0 %596
      %598 = vrot.lane.b32.xlu0 %v380, 28
      %v599 = vpop.permute.xlu0 %598
      %600 = vrot.lane.b32.xlu0 %v381, 28
      %v601 = vpop.permute.xlu0 %600
      %602 = vrot.lane.b32.xlu0 %v382, 28
      %v603 = vpop.permute.xlu0 %602
      %604 = vrot.lane.b32.xlu0 %v383, 28
      %v605 = vpop.permute.xlu0 %604
      %606 = vrot.lane.b32.xlu0 %v384, 28
      %v607 = vpop.permute.xlu0 %606
      %608 = vrot.lane.b32.xlu0 %v385, 28
      %v609 = vpop.permute.xlu0 %608
      %626 = vrot.lane.b32.xlu0 %v386, 32
      %v627 = vpop.permute.xlu0 %626
      %628 = vrot.lane.b32.xlu0 %v387, 32
      %v629 = vpop.permute.xlu0 %628
      %630 = vrot.lane.b32.xlu0 %v388, 32
      %v631 = vpop.permute.xlu0 %630
      %632 = vrot.lane.b32.xlu0 %v389, 32
      %v633 = vpop.permute.xlu0 %632
      %634 = vrot.lane.b32.xlu0 %v390, 32
      %v635 = vpop.permute.xlu0 %634
      %636 = vrot.lane.b32.xlu0 %v391, 32
      %v637 = vpop.permute.xlu0 %636
      %638 = vrot.lane.b32.xlu0 %v392, 32
      %v639 = vpop.permute.xlu0 %638
      %640 = vrot.lane.b32.xlu0 %v393, 32
      %v641 = vpop.permute.xlu0 %640
      %vm650 = vcmask 31744
      %v651 = vsel %vm650, %v321, %v403
      %v652 = vsel %vm650, %v322, %v405
      %v653 = vsel %vm650, %v323, %v407
      %v654 = vsel %vm650, %v324, %v409
      %v655 = vsel %vm650, %v325, %v411
      %v656 = vsel %vm650, %v326, %v413
      %v657 = vsel %vm650, %v327, %v415
      %v658 = vsel %vm650, %v328, %v417
      %v659 = vsel %vm290, %v651, %v435
      %v660 = vsel %vm290, %v652, %v437
      %v661 = vsel %vm290, %v653, %v439
      %v662 = vsel %vm290, %v654, %v441
      %v663 = vsel %vm290, %v655, %v443
      %v664 = vsel %vm290, %v656, %v445
      %v665 = vsel %vm290, %v657, %v447
      %v666 = vsel %vm290, %v658, %v449
      %vm667 = vcmask 97280
      %v668 = vsel %vm667, %v659, %v467
      %v669 = vsel %vm667, %v660, %v469
      %v670 = vsel %vm667, %v661, %v471
      %v671 = vsel %vm667, %v662, %v473
      %v672 = vsel %vm667, %v663, %v475
      %v673 = vsel %vm667, %v664, %v477
      %v674 = vsel %vm667, %v665, %v479
      %v675 = vsel %vm667, %v666, %v481
      %vm676 = vcmask 130048
      %v677 = vsel %vm676, %v668, %v499
      %v678 = vsel %vm676, %v669, %v501
      %v679 = vsel %vm676, %v670, %v503
      %v680 = vsel %vm676, %v671, %v505
      %v681 = vsel %vm676, %v672, %v507
      %v682 = vsel %vm676, %v673, %v509
      %v683 = vsel %vm676, %v674, %v511
      %v684 = vsel %vm676, %v675, %v513
      %vm685 = vcmask 162816
      %v686 = vsel %vm685, %v677, %v531
      %v687 = vsel %vm685, %v678, %v533
      %v688 = vsel %vm685, %v679, %v535
      %v689 = vsel %vm685, %v680, %v537
      %v690 = vsel %vm685, %v681, %v539
      %v691 = vsel %vm685, %v682, %v541
      %v692 = vsel %vm685, %v683, %v543
      %v693 = vsel %vm685, %v684, %v545
      %vm694 = vcmask 195584
      %v695 = vsel %vm694, %v686, %v563
      %v696 = vsel %vm694, %v687, %v565
      %v697 = vsel %vm694, %v688, %v567
      %v698 = vsel %vm694, %v689, %v569
      %v699 = vsel %vm694, %v690, %v571
      %v700 = vsel %vm694, %v691, %v573
      %v701 = vsel %vm694, %v692, %v575
      %v702 = vsel %vm694, %v693, %v577
      %vm703 = vcmask 228352
      %v704 = vsel %vm703, %v695, %v595
      %v705 = vsel %vm703, %v696, %v597
      %v706 = vsel %vm703, %v697, %v599
      %v707 = vsel %vm703, %v698, %v601
      %v708 = vsel %vm703, %v699, %v603
      %v709 = vsel %vm703, %v700, %v605
      %v710 = vsel %vm703, %v701, %v607
      %v711 = vsel %vm703, %v702, %v609
      %vm712 = vcmask 261120
      %v713 = vsel %vm712, %v704, %v627
      %v714 = vsel %vm712, %v705, %v629
      %v715 = vsel %vm712, %v706, %v631
      %v716 = vsel %vm712, %v707, %v633
      %v717 = vsel %vm712, %v708, %v635
      %v718 = vsel %vm712, %v709, %v637
      %v719 = vsel %vm712, %v710, %v639
      %v720 = vsel %vm712, %v711, %v641
      %v721 = vld [vmem:[%s3] sm:$0xff]
      %v722 = vld [vmem:[%s3 + $0x8] sm:$0xff]
      %v723 = vld [vmem:[%s3 + $0x10] sm:$0xff]
      %v724 = vld [vmem:[%s3 + $0x18] sm:$0xff]
      %v725 = vld [vmem:[%s3 + $0x20] sm:$0xf]
      %vm726 = vcmask 293888
      %v728 = vsel %vm726, %v713, 0
      %v731 = vsel %vm726, %v714, 0
      %v734 = vsel %vm726, %v715, 0
      %v737 = vsel %vm726, %v716, 0
      %v740 = vsel %vm726, %v717, 0
      %v743 = vsel %vm726, %v718, 0
      %v746 = vsel %vm726, %v719, 0
      %v749 = vsel %vm726, %v720, 0
      %vm751 = vcmask 1043456
      %v753 = vsel %vm751, %v725, 0
      %755 = vmatpush.msra.mxu0 0.0
      %756 = vmatpush.msra.mxu0 0.0
      %757 = vmatpush.msra.mxu0 0.0
      %758 = vmatpush.msra.mxu0 0.0
      %759 = vmatpush.msra.mxu0 0.0
      %760 = vmatpush.msra.mxu0 0.0
      %761 = vmatpush.msra.mxu0 0.0
      %762 = vmatpush.msra.mxu0 0.0
      %763 = vmatpush.msra.mxu0 0.0
      %764 = vmatpush.msra.mxu0 0.0
      %765 = vmatpush.msra.mxu0 0.0
      %766 = vmatpush.msra.mxu0 %v753
      %767 = vmatpush.msra.mxu0 %v724
      %768 = vmatpush.msra.mxu0 %v723
      %769 = vmatpush.msra.mxu0 %v722
      %770 = vmatpush.msra.mxu0 %v721
      %771 = vmatmul.f32.gmra.mxu0 %v728
      %v772 = vpop.f32.mrf.mxu0
      %v773 = vadd.f32 0.0, %v772
      %774 = vmatmul.f32.gmra.mxu0 %v731
      %v775 = vpop.f32.mrf.mxu0
      %v776 = vadd.f32 0.0, %v775
      %777 = vmatmul.f32.gmra.mxu0 %v734
      %v778 = vpop.f32.mrf.mxu0
      %v779 = vadd.f32 0.0, %v778
      %780 = vmatmul.f32.gmra.mxu0 %v737
      %v781 = vpop.f32.mrf.mxu0
      %v782 = vadd.f32 0.0, %v781
      %783 = vmatmul.f32.gmra.mxu0 %v740
      %v784 = vpop.f32.mrf.mxu0
      %v785 = vadd.f32 0.0, %v784
      %786 = vmatmul.f32.gmra.mxu0 %v743
      %v787 = vpop.f32.mrf.mxu0
      %v788 = vadd.f32 0.0, %v787
      %789 = vmatmul.f32.gmra.mxu0 %v746
      %v790 = vpop.f32.mrf.mxu0
      %v791 = vadd.f32 0.0, %v790
      %792 = vmatmul.f32.gmra.mxu0 %v749
      %v793 = vpop.f32.mrf.mxu0
      %v794 = vadd.f32 0.0, %v793
      %795 = vdwg.mxu0
      %804 = vrot.lane.b32.xlu0 %v321, 124
      %v805 = vpop.permute.xlu0 %804
      %806 = vrot.lane.b32.xlu0 %v322, 124
      %v807 = vpop.permute.xlu0 %806
      %808 = vrot.lane.b32.xlu0 %v323, 124
      %v809 = vpop.permute.xlu0 %808
      %810 = vrot.lane.b32.xlu0 %v324, 124
      %v811 = vpop.permute.xlu0 %810
      %812 = vrot.lane.b32.xlu0 %v325, 124
      %v813 = vpop.permute.xlu0 %812
      %814 = vrot.lane.b32.xlu0 %v326, 124
      %v815 = vpop.permute.xlu0 %814
      %816 = vrot.lane.b32.xlu0 %v327, 124
      %v817 = vpop.permute.xlu0 %816
      %818 = vrot.lane.b32.xlu0 %v328, 124
      %v819 = vpop.permute.xlu0 %818
      %828 = vrot.lane.b32.xlu0 %v337, 4
      %v829 = vpop.permute.xlu0 %828
      %830 = vrot.lane.b32.xlu0 %v338, 4
      %v831 = vpop.permute.xlu0 %830
      %832 = vrot.lane.b32.xlu0 %v339, 4
      %v833 = vpop.permute.xlu0 %832
      %834 = vrot.lane.b32.xlu0 %v340, 4
      %v835 = vpop.permute.xlu0 %834
      %836 = vrot.lane.b32.xlu0 %v341, 4
      %v837 = vpop.permute.xlu0 %836
      %838 = vrot.lane.b32.xlu0 %v342, 4
      %v839 = vpop.permute.xlu0 %838
      %840 = vrot.lane.b32.xlu0 %v343, 4
      %v841 = vpop.permute.xlu0 %840
      %842 = vrot.lane.b32.xlu0 %v344, 4
      %v843 = vpop.permute.xlu0 %842
      %852 = vrot.lane.b32.xlu0 %v345, 8
      %v853 = vpop.permute.xlu0 %852
      %854 = vrot.lane.b32.xlu0 %v346, 8
      %v855 = vpop.permute.xlu0 %854
      %856 = vrot.lane.b32.xlu0 %v347, 8
      %v857 = vpop.permute.xlu0 %856
      %858 = vrot.lane.b32.xlu0 %v348, 8
      %v859 = vpop.permute.xlu0 %858
      %860 = vrot.lane.b32.xlu0 %v349, 8
      %v861 = vpop.permute.xlu0 %860
      %862 = vrot.lane.b32.xlu0 %v350, 8
      %v863 = vpop.permute.xlu0 %862
      %864 = vrot.lane.b32.xlu0 %v351, 8
      %v865 = vpop.permute.xlu0 %864
      %866 = vrot.lane.b32.xlu0 %v352, 8
      %v867 = vpop.permute.xlu0 %866
      %876 = vrot.lane.b32.xlu0 %v353, 12
      %v877 = vpop.permute.xlu0 %876
      %878 = vrot.lane.b32.xlu0 %v354, 12
      %v879 = vpop.permute.xlu0 %878
      %880 = vrot.lane.b32.xlu0 %v355, 12
      %v881 = vpop.permute.xlu0 %880
      %882 = vrot.lane.b32.xlu0 %v356, 12
      %v883 = vpop.permute.xlu0 %882
      %884 = vrot.lane.b32.xlu0 %v357, 12
      %v885 = vpop.permute.xlu0 %884
      %886 = vrot.lane.b32.xlu0 %v358, 12
      %v887 = vpop.permute.xlu0 %886
      %888 = vrot.lane.b32.xlu0 %v359, 12
      %v889 = vpop.permute.xlu0 %888
      %890 = vrot.lane.b32.xlu0 %v360, 12
      %v891 = vpop.permute.xlu0 %890
      %900 = vrot.lane.b32.xlu0 %v361, 16
      %v901 = vpop.permute.xlu0 %900
      %902 = vrot.lane.b32.xlu0 %v362, 16
      %v903 = vpop.permute.xlu0 %902
      %904 = vrot.lane.b32.xlu0 %v363, 16
      %v905 = vpop.permute.xlu0 %904
      %906 = vrot.lane.b32.xlu0 %v364, 16
      %v907 = vpop.permute.xlu0 %906
      %908 = vrot.lane.b32.xlu0 %v365, 16
      %v909 = vpop.permute.xlu0 %908
      %910 = vrot.lane.b32.xlu0 %v366, 16
      %v911 = vpop.permute.xlu0 %910
      %912 = vrot.lane.b32.xlu0 %v367, 16
      %v913 = vpop.permute.xlu0 %912
      %914 = vrot.lane.b32.xlu0 %v368, 16
      %v915 = vpop.permute.xlu0 %914
      %924 = vrot.lane.b32.xlu0 %v370, 20
      %v925 = vpop.permute.xlu0 %924
      %926 = vrot.lane.b32.xlu0 %v371, 20
      %v927 = vpop.permute.xlu0 %926
      %928 = vrot.lane.b32.xlu0 %v372, 20
      %v929 = vpop.permute.xlu0 %928
      %930 = vrot.lane.b32.xlu0 %v373, 20
      %v931 = vpop.permute.xlu0 %930
      %932 = vrot.lane.b32.xlu0 %v374, 20
      %v933 = vpop.permute.xlu0 %932
      %934 = vrot.lane.b32.xlu0 %v375, 20
      %v935 = vpop.permute.xlu0 %934
      %936 = vrot.lane.b32.xlu0 %v376, 20
      %v937 = vpop.permute.xlu0 %936
      %938 = vrot.lane.b32.xlu0 %v377, 20
      %v939 = vpop.permute.xlu0 %938
      %948 = vrot.lane.b32.xlu0 %v378, 24
      %v949 = vpop.permute.xlu0 %948
      %950 = vrot.lane.b32.xlu0 %v379, 24
      %v951 = vpop.permute.xlu0 %950
      %952 = vrot.lane.b32.xlu0 %v380, 24
      %v953 = vpop.permute.xlu0 %952
      %954 = vrot.lane.b32.xlu0 %v381, 24
      %v955 = vpop.permute.xlu0 %954
      %956 = vrot.lane.b32.xlu0 %v382, 24
      %v957 = vpop.permute.xlu0 %956
      %958 = vrot.lane.b32.xlu0 %v383, 24
      %v959 = vpop.permute.xlu0 %958
      %960 = vrot.lane.b32.xlu0 %v384, 24
      %v961 = vpop.permute.xlu0 %960
      %962 = vrot.lane.b32.xlu0 %v385, 24
      %v963 = vpop.permute.xlu0 %962
      %972 = vrot.lane.b32.xlu0 %v386, 28
      %v973 = vpop.permute.xlu0 %972
      %974 = vrot.lane.b32.xlu0 %v387, 28
      %v975 = vpop.permute.xlu0 %974
      %976 = vrot.lane.b32.xlu0 %v388, 28
      %v977 = vpop.permute.xlu0 %976
      %978 = vrot.lane.b32.xlu0 %v389, 28
      %v979 = vpop.permute.xlu0 %978
      %980 = vrot.lane.b32.xlu0 %v390, 28
      %v981 = vpop.permute.xlu0 %980
      %982 = vrot.lane.b32.xlu0 %v391, 28
      %v983 = vpop.permute.xlu0 %982
      %984 = vrot.lane.b32.xlu0 %v392, 28
      %v985 = vpop.permute.xlu0 %984
      %986 = vrot.lane.b32.xlu0 %v393, 28
      %v987 = vpop.permute.xlu0 %986
      %v996 = vsel %vm650, %v805, %v329
      %v997 = vsel %vm650, %v807, %v330
      %v998 = vsel %vm650, %v809, %v331
      %v999 = vsel %vm650, %v811, %v332
      %v1000 = vsel %vm650, %v813, %v333
      %v1001 = vsel %vm650, %v815, %v334
      %v1002 = vsel %vm650, %v817, %v335
      %v1003 = vsel %vm650, %v819, %v336
      %v1004 = vsel %vm290, %v996, %v829
      %v1005 = vsel %vm290, %v997, %v831
      %v1006 = vsel %vm290, %v998, %v833
      %v1007 = vsel %vm290, %v999, %v835
      %v1008 = vsel %vm290, %v1000, %v837
      %v1009 = vsel %vm290, %v1001, %v839
      %v1010 = vsel %vm290, %v1002, %v841
      %v1011 = vsel %vm290, %v1003, %v843
      %v1012 = vsel %vm667, %v1004, %v853
      %v1013 = vsel %vm667, %v1005, %v855
      %v1014 = vsel %vm667, %v1006, %v857
      %v1015 = vsel %vm667, %v1007, %v859
      %v1016 = vsel %vm667, %v1008, %v861
      %v1017 = vsel %vm667, %v1009, %v863
      %v1018 = vsel %vm667, %v1010, %v865
      %v1019 = vsel %vm667, %v1011, %v867
      %v1020 = vsel %vm676, %v1012, %v877
      %v1021 = vsel %vm676, %v1013, %v879
      %v1022 = vsel %vm676, %v1014, %v881
      %v1023 = vsel %vm676, %v1015, %v883
      %v1024 = vsel %vm676, %v1016, %v885
      %v1025 = vsel %vm676, %v1017, %v887
      %v1026 = vsel %vm676, %v1018, %v889
      %v1027 = vsel %vm676, %v1019, %v891
      %v1028 = vsel %vm685, %v1020, %v901
      %v1029 = vsel %vm685, %v1021, %v903
      %v1030 = vsel %vm685, %v1022, %v905
      %v1031 = vsel %vm685, %v1023, %v907
      %v1032 = vsel %vm685, %v1024, %v909
      %v1033 = vsel %vm685, %v1025, %v911
      %v1034 = vsel %vm685, %v1026, %v913
      %v1035 = vsel %vm685, %v1027, %v915
      %v1036 = vsel %vm694, %v1028, %v925
      %v1037 = vsel %vm694, %v1029, %v927
      %v1038 = vsel %vm694, %v1030, %v929
      %v1039 = vsel %vm694, %v1031, %v931
      %v1040 = vsel %vm694, %v1032, %v933
      %v1041 = vsel %vm694, %v1033, %v935
      %v1042 = vsel %vm694, %v1034, %v937
      %v1043 = vsel %vm694, %v1035, %v939
      %v1044 = vsel %vm703, %v1036, %v949
      %v1045 = vsel %vm703, %v1037, %v951
      %v1046 = vsel %vm703, %v1038, %v953
      %v1047 = vsel %vm703, %v1039, %v955
      %v1048 = vsel %vm703, %v1040, %v957
      %v1049 = vsel %vm703, %v1041, %v959
      %v1050 = vsel %vm703, %v1042, %v961
      %v1051 = vsel %vm703, %v1043, %v963
      %v1052 = vsel %vm712, %v1044, %v973
      %v1053 = vsel %vm712, %v1045, %v975
      %v1054 = vsel %vm712, %v1046, %v977
      %v1055 = vsel %vm712, %v1047, %v979
      %v1056 = vsel %vm712, %v1048, %v981
      %v1057 = vsel %vm712, %v1049, %v983
      %v1058 = vsel %vm712, %v1050, %v985
      %v1059 = vsel %vm712, %v1051, %v987
      %s1060 = scalar_lea.vmem %s3, 40
      %v1061 = vld [vmem:[%s1060] sm:$0xff]
      %v1062 = vld [vmem:[%s1060 + $0x8] sm:$0xff]
      %v1063 = vld [vmem:[%s1060 + $0x10] sm:$0xff]
      %v1064 = vld [vmem:[%s1060 + $0x18] sm:$0xff]
      %v1065 = vld [vmem:[%s1060 + $0x20] sm:$0xf]
      %v1067 = vsel %vm726, %v1052, 0
      %v1070 = vsel %vm726, %v1053, 0
      %v1073 = vsel %vm726, %v1054, 0
      %v1076 = vsel %vm726, %v1055, 0
      %v1079 = vsel %vm726, %v1056, 0
      %v1082 = vsel %vm726, %v1057, 0
      %v1085 = vsel %vm726, %v1058, 0
      %v1088 = vsel %vm726, %v1059, 0
      %v1091 = vsel %vm751, %v1065, 0
      %1093 = vmatpush.msra.mxu0 0.0
      %1094 = vmatpush.msra.mxu0 0.0
      %1095 = vmatpush.msra.mxu0 0.0
      %1096 = vmatpush.msra.mxu0 0.0
      %1097 = vmatpush.msra.mxu0 0.0
      %1098 = vmatpush.msra.mxu0 0.0
      %1099 = vmatpush.msra.mxu0 0.0
      %1100 = vmatpush.msra.mxu0 0.0
      %1101 = vmatpush.msra.mxu0 0.0
      %1102 = vmatpush.msra.mxu0 0.0
      %1103 = vmatpush.msra.mxu0 0.0
      %1104 = vmatpush.msra.mxu0 %v1091
      %1105 = vmatpush.msra.mxu0 %v1064
      %1106 = vmatpush.msra.mxu0 %v1063
      %1107 = vmatpush.msra.mxu0 %v1062
      %1108 = vmatpush.msra.mxu0 %v1061
      %1109 = vmatmul.f32.gmra.mxu0 %v1067
      %v1110 = vpop.f32.mrf.mxu0
      %v1111 = vadd.f32 0.0, %v1110
      %1112 = vmatmul.f32.gmra.mxu0 %v1070
      %v1113 = vpop.f32.mrf.mxu0
      %v1114 = vadd.f32 0.0, %v1113
      %1115 = vmatmul.f32.gmra.mxu0 %v1073
      %v1116 = vpop.f32.mrf.mxu0
      %v1117 = vadd.f32 0.0, %v1116
      %1118 = vmatmul.f32.gmra.mxu0 %v1076
      %v1119 = vpop.f32.mrf.mxu0
      %v1120 = vadd.f32 0.0, %v1119
      %1121 = vmatmul.f32.gmra.mxu0 %v1079
      %v1122 = vpop.f32.mrf.mxu0
      %v1123 = vadd.f32 0.0, %v1122
      %1124 = vmatmul.f32.gmra.mxu0 %v1082
      %v1125 = vpop.f32.mrf.mxu0
      %v1126 = vadd.f32 0.0, %v1125
      %1127 = vmatmul.f32.gmra.mxu0 %v1085
      %v1128 = vpop.f32.mrf.mxu0
      %v1129 = vadd.f32 0.0, %v1128
      %1130 = vmatmul.f32.gmra.mxu0 %v1088
      %v1131 = vpop.f32.mrf.mxu0
      %v1132 = vadd.f32 0.0, %v1131
      %1133 = vdwg.mxu0
      %1142 = vrot.lane.b32.xlu0 %v1111, 4
      %v1143 = vpop.permute.xlu0 %1142
      %1144 = vrot.lane.b32.xlu0 %v1114, 4
      %v1145 = vpop.permute.xlu0 %1144
      %1146 = vrot.lane.b32.xlu0 %v1117, 4
      %v1147 = vpop.permute.xlu0 %1146
      %1148 = vrot.lane.b32.xlu0 %v1120, 4
      %v1149 = vpop.permute.xlu0 %1148
      %1150 = vrot.lane.b32.xlu0 %v1123, 4
      %v1151 = vpop.permute.xlu0 %1150
      %1152 = vrot.lane.b32.xlu0 %v1126, 4
      %v1153 = vpop.permute.xlu0 %1152
      %1154 = vrot.lane.b32.xlu0 %v1129, 4
      %v1155 = vpop.permute.xlu0 %1154
      %1156 = vrot.lane.b32.xlu0 %v1132, 4
      %v1157 = vpop.permute.xlu0 %1156
      %v1166 = vsel %vm650, %v773, %v1143
      %v1167 = vsel %vm650, %v776, %v1145
      %v1168 = vsel %vm650, %v779, %v1147
      %v1169 = vsel %vm650, %v782, %v1149
      %v1170 = vsel %vm650, %v785, %v1151
      %v1171 = vsel %vm650, %v788, %v1153
      %v1172 = vsel %vm650, %v791, %v1155
      %v1173 = vsel %vm650, %v794, %v1157
      %v1174 = vld [vmem:[%s4] sm:$0x1]
      %v1176 = vperm.slane %v1174, 0
      %v1178 = vadd.f32 %v1166, %v1176
      %v1179 = vadd.f32 %v1167, %v1176
      %v1180 = vadd.f32 %v1168, %v1176
      %v1181 = vadd.f32 %v1169, %v1176
      %v1182 = vadd.f32 %v1170, %v1176
      %v1183 = vadd.f32 %v1171, %v1176
      %v1184 = vadd.f32 %v1172, %v1176
      %v1185 = vadd.f32 %v1173, %v1176
      %1186 = vst.msk [vmem:[%s249] sm:$0xff] %vm290, %v1178
      %1187 = vst.msk [vmem:[%s249 + $0x8] sm:$0xff] %vm290, %v1179
      %1188 = vst.msk [vmem:[%s249 + $0x10] sm:$0xff] %vm290, %v1180
      %1189 = vst.msk [vmem:[%s249 + $0x18] sm:$0xff] %vm290, %v1181
      %1190 = vst.msk [vmem:[%s249 + $0x20] sm:$0xff] %vm290, %v1182
      %1191 = vst.msk [vmem:[%s249 + $0x28] sm:$0xff] %vm290, %v1183
      %1192 = vst.msk [vmem:[%s249 + $0x30] sm:$0xff] %vm290, %v1184
      %1193 = vst.msk [vmem:[%s249 + $0x38] sm:$0xff] %vm290, %v1185
      %v1194 = vsel %vm290, %v1178, 0.0
      %v1195 = vsel %vm290, %v1179, 0.0
      %v1196 = vadd.f32 %v1194, %v1195
      %v1197 = vsel %vm290, %v1180, 0.0
      %v1198 = vadd.f32 %v1196, %v1197
      %v1199 = vsel %vm290, %v1181, 0.0
      %v1200 = vadd.f32 %v1198, %v1199
      %v1201 = vsel %vm290, %v1182, 0.0
      %v1202 = vadd.f32 %v1200, %v1201
      %v1203 = vsel %vm290, %v1183, 0.0
      %v1204 = vadd.f32 %v1202, %v1203
      %v1205 = vsel %vm290, %v1184, 0.0
      %v1206 = vadd.f32 %v1204, %v1205
      %v1207 = vsel %vm290, %v1185, 0.0
      %v1208 = vadd.f32 %v1206, %v1207
      %v1209 = vrot.slane %v1208, 4
      %v1210 = vadd.f32 %v1208, %v1209
      %v1211 = vrot.slane %v1210, 2
      %v1212 = vadd.f32 %v1210, %v1211
      %v1213 = vrot.slane %v1212, 1
      %v1214 = vadd.f32 %v1212, %v1213
      %v1215 = vmul.f32 %v1178, %v1178
      %v1216 = vmul.f32 %v1179, %v1179
      %v1217 = vmul.f32 %v1180, %v1180
      %v1218 = vmul.f32 %v1181, %v1181
      %v1219 = vmul.f32 %v1182, %v1182
      %v1220 = vmul.f32 %v1183, %v1183
      %v1221 = vmul.f32 %v1184, %v1184
      %v1222 = vmul.f32 %v1185, %v1185
      %v1223 = vsel %vm290, %v1215, 0.0
      %v1224 = vsel %vm290, %v1216, 0.0
      %v1225 = vadd.f32 %v1223, %v1224
      %v1226 = vsel %vm290, %v1217, 0.0
      %v1227 = vadd.f32 %v1225, %v1226
      %v1228 = vsel %vm290, %v1218, 0.0
      %v1229 = vadd.f32 %v1227, %v1228
      %v1230 = vsel %vm290, %v1219, 0.0
      %v1231 = vadd.f32 %v1229, %v1230
      %v1232 = vsel %vm290, %v1220, 0.0
      %v1233 = vadd.f32 %v1231, %v1232
      %v1234 = vsel %vm290, %v1221, 0.0
      %v1235 = vadd.f32 %v1233, %v1234
      %v1236 = vsel %vm290, %v1222, 0.0
      %v1237 = vadd.f32 %v1235, %v1236
      %v1238 = vrot.slane %v1237, 4
      %v1239 = vadd.f32 %v1237, %v1238
      %v1240 = vrot.slane %v1239, 2
      %v1241 = vadd.f32 %v1239, %v1240
      %v1242 = vrot.slane %v1241, 1
      %v1243 = vadd.f32 %v1241, %v1242
      %vm1244 = vcmask 1040384
      %v1245 = vsel %vm1244, %v1214, %v1243
      %p1246 = scmp.eq.s32.totalorder %s18, 0
      // Predicated region
      $region41: #{residual_block_forward.5} parent=39 // pred_check
        %p1247 = pneg %p1246
      $region42: #{residual_block_forward.5} parent=39 // pred_check_branch
        %1249 = sbr.rel (%p1247) target = $region44
      $region43: #{residual_block_forward.5} parent=39 // pred_region
        %1250 = vst.msk [vmem:[%s6] sm:$0x3] %vm292, 0.0
      $region44: #{residual_block_forward.5} parent=39 // pred_fallthru
        _
      %v1251 = vld [vmem:[%s6] sm:$0x3]
      %v1252 = vadd.f32 %v1251, %v1245
      %1253 = vst.msk [vmem:[%s6] sm:$0x3] %vm292, %v1252
      %p1254 = scmp.lt.s32.totalorder %s18, 1
      %s1255 = scalar_select %p1254, %s18, 1
      %s1256 = smul.addr %s1255, 8
      %s1257 = smul.addr %s1256, 8
      %s1258 = scalar_lea.vmem %s5, %s1257
      // Predicated region
      $region45: #{residual_block_forward.5} parent=39 // pred_check
        %p1259 = pneg %p146
      $region46: #{residual_block_forward.5} parent=39 // pred_check_branch
        %1261 = sbr.rel (%p1259) target = $region48
      $region47: #{residual_block_forward.5} parent=39 // pred_region
        _
      $region48: #{residual_block_forward.5} parent=39 // pred_fallthru
        _
      // Predicated region
      $region49: #{residual_block_forward.5} parent=39 // pred_check
        %p1262 = pneg %p167
      $region50: #{residual_block_forward.5} parent=39 // pred_check_branch
        %1264 = sbr.rel (%p1262) target = $region52
      $region51: #{residual_block_forward.5} parent=39 // pred_region
        _
      $region52: #{residual_block_forward.5} parent=39 // pred_fallthru
        _
      // Predicated region
      $region53: #{residual_block_forward.5} parent=39 // pred_check
        %p1265 = pneg %p167
      $region54: #{residual_block_forward.5} parent=39 // pred_check_branch
        %1267 = sbr.rel (%p1265) target = $region56
      $region55: #{residual_block_forward.5} parent=39 // pred_region
        _
      $region56: #{residual_block_forward.5} parent=39 // pred_fallthru
        _
    $region40: #{residual_block_forward.5} parent=5 // pred_fallthru
      _
    %p1268 = scmp.le.s32.totalorder 2, %s13
    // Predicated region
    $region57: #{residual_block_forward.5} parent=5 // pred_check
      %p1269 = pneg %p1268
    $region58: #{residual_block_forward.5} parent=5 // pred_check_branch
      %1271 = sbr.rel (%p1269) target = $region60
    $region59: #{residual_block_forward.5} parent=5 // pred_region
      %s1272 = ssub.s32 %s13, 2
      // Predicated region
      $region61: #{residual_block_forward.5} parent=59 // pred_check
        %p1273 = pneg %p152
      $region62: #{residual_block_forward.5} parent=59 // pred_check_branch
        %1275 = sbr.rel (%p1273) target = $region64
      $region63: #{residual_block_forward.5} parent=59 // pred_region
        %p1276 = scmp.lt.s32.totalorder %s19, 1
        %s1277 = scalar_select %p1276, %s19, 1
        %s1278 = smul.addr %s1277, 8
        %s1279 = smul.addr %s1278, 8
        %s1280 = scalar_lea.vmem %s5, %s1279
      $region64: #{residual_block_forward.5} parent=59 // pred_fallthru
        _
    $region60: #{residual_block_forward.5} parent=5 // pred_fallthru
      _
  $region6: #{residual_block_forward.5} parent=0 // loop_footer
    %s17 = sadd.s32 1, %s13
  $region7: #{residual_block_forward.5} parent=0 // loop_footer_branch
    %12 = sbr.rel target = $region3
  $region8: #{residual_block_forward.5} parent=0 // loop_exit
    _

</llo_original>
